<compile_context>
chip_gen: v7x
topology: tpu7x:2x2x1
jax: 0.10.0
libtpu: 0.0.40
codegen_flags: <defaults>
</compile_context>

<pallas_src>
import math
from functools import partial

import jax
import jax.numpy as jnp
from jax import lax
from jax.experimental import pallas as pl
from jax.experimental.pallas import tpu as pltpu

_MASK_FILL = -1e30  # large finite negative instead of -inf (avoids inf-inf -> NaN)


def _attention_kernel(*refs, scale, has_mask, compute_dtype, approx_recip):
    # Refs (per grid step (b, i)):
    #   q_ref            : [1, TQ, E]
    #   k_ref, v_ref     : [1, S, E]   (block index constant in i -> DMA'd once per batch)
    #   wq/wk/wv         : [E, D]
    #   mask_ref (opt)   : [TQ, S] int8 (nonzero == masked)
    #   out_ref          : [1, TQ, D]
    #   attn_ref         : [1, TQ, S]
    #   kproj/vproj      : [S, D] scratch (persist across q tiles of a batch)
    if has_mask:
        (q_ref, k_ref, v_ref, wq_ref, wk_ref, wv_ref, mask_ref,
         out_ref, attn_ref, kproj_ref, vproj_ref) = refs
    else:
        (q_ref, k_ref, v_ref, wq_ref, wk_ref, wv_ref,
         out_ref, attn_ref, kproj_ref, vproj_ref) = refs
        mask_ref = None

    # Project K and V once per batch (first q-tile of this batch), reuse for all q tiles.
    @pl.when(pl.program_id(1) == 0)
    def _():
        k = k_ref[0].astype(compute_dtype)
        v = v_ref[0].astype(compute_dtype)
        kproj_ref[...] = jnp.dot(
            k, wk_ref[...].astype(compute_dtype),
            preferred_element_type=jnp.float32).astype(kproj_ref.dtype)
        vproj_ref[...] = jnp.dot(
            v, wv_ref[...].astype(compute_dtype),
            preferred_element_type=jnp.float32).astype(vproj_ref.dtype)

    # Q projection for this q tile; fold 1/sqrt(d) into the small [TQ, D] tensor.
    q = q_ref[0].astype(compute_dtype)
    Q = jnp.dot(q, wq_ref[...].astype(compute_dtype),
                preferred_element_type=jnp.float32)
    Qs = (Q * scale).astype(compute_dtype)

    # scores = Q @ K^T without materializing a transposed copy of K.
    scores = lax.dot_general(
        Qs, kproj_ref[...],
        dimension_numbers=(((1,), (1,)), ((), ())),
        preferred_element_type=jnp.float32)  # [TQ, S] f32

    if mask_ref is not None:
        scores = jnp.where(mask_ref[...] != 0, jnp.float32(_MASK_FILL), scores)

    # Numerically stable softmax over the key axis.
    m = jnp.max(scores, axis=-1, keepdims=True)
    e = jnp.exp(scores - m)
    denom = jnp.sum(e, axis=-1, keepdims=True)
    if approx_recip:
        attn = e * pl.reciprocal(denom, approx=True)
    else:
        attn = e / denom

    attn_ref[0] = attn.astype(attn_ref.dtype)
    out_ref[0] = jnp.dot(attn.astype(compute_dtype), vproj_ref[...],
                         preferred_element_type=jnp.float32).astype(out_ref.dtype)


def _pick_q_tile(seq_len, max_tile=128):
    """Largest q-tile <= max_tile that divides seq_len and is a multiple of 8 (or full seq)."""
    if seq_len <= max_tile:
        return seq_len
    for t in range(max_tile, 7, -8):
        if seq_len % t == 0:
            return t
    return seq_len


def attention_forward(q, k, v, wq, wk, wv, mask=None, *, use_bf16=True, max_q_tile=128):
    """Pallas scaled dot-product attention.

    Args:
      q, k, v: [bs, seq_len, emb_dim] float32.
      wq, wk, wv: [emb_dim, d] float32 (transposed nn.Linear weights, bias=False).
      mask: optional [seq_len, seq_len] bool; True entries get a -inf-like fill before softmax.
      use_bf16: use bf16 MXU operands (f32 accumulation) and EUP approx reciprocal.

    Returns:
      out:  [bs, seq_len, d] float32
      attn: [bs, seq_len, seq_len] float32
    """
    bs, seq_len, emb_dim = q.shape
    d = wq.shape[1]
    scale = 1.0 / math.sqrt(d)
    compute_dtype = jnp.bfloat16 if use_bf16 else jnp.float32

    tq = _pick_q_tile(seq_len, max_q_tile)
    nq = seq_len // tq
    has_mask = mask is not None

    kernel = partial(_attention_kernel, scale=scale, has_mask=has_mask,
                     compute_dtype=compute_dtype, approx_recip=use_bf16)

    in_specs = [
        pl.BlockSpec((1, tq, emb_dim), lambda b, i: (b, i, 0)),   # q (tiled)
        pl.BlockSpec((1, seq_len, emb_dim), lambda b, i: (b, 0, 0)),  # k (full per batch)
        pl.BlockSpec((1, seq_len, emb_dim), lambda b, i: (b, 0, 0)),  # v (full per batch)
        pl.BlockSpec((emb_dim, d), lambda b, i: (0, 0)),          # wq
        pl.BlockSpec((emb_dim, d), lambda b, i: (0, 0)),          # wk
        pl.BlockSpec((emb_dim, d), lambda b, i: (0, 0)),          # wv
    ]
    args = [q, k, v, wq, wk, wv]
    if has_mask:
        in_specs.append(pl.BlockSpec((tq, seq_len), lambda b, i: (i, 0)))
        args.append(mask.astype(jnp.int8))

    out_shapes = (
        jax.ShapeDtypeStruct((bs, seq_len, d), jnp.float32),
        jax.ShapeDtypeStruct((bs, seq_len, seq_len), jnp.float32),
    )
    out_specs = (
        pl.BlockSpec((1, tq, d), lambda b, i: (b, i, 0)),
        pl.BlockSpec((1, tq, seq_len), lambda b, i: (b, i, 0)),
    )

    out, attn = pl.pallas_call(
        kernel,
        out_shape=out_shapes,
        grid_spec=pltpu.PrefetchScalarGridSpec(
            num_scalar_prefetch=0,
            grid=(bs, nq),
            in_specs=in_specs,
            out_specs=out_specs,
            scratch_shapes=[
                pltpu.VMEM((seq_len, d), compute_dtype),  # K projection (per batch)
                pltpu.VMEM((seq_len, d), compute_dtype),  # V projection (per batch)
            ],
        ),
        compiler_params=pltpu.CompilerParams(
            # q-tile axis is "arbitrary" because the K/V-projection scratch carries across it.
            dimension_semantics=("parallel", "arbitrary"),
            vmem_limit_bytes=64 * 1024 * 1024,
        ),
    )(*args)
    return out, attn


def reference_forward(q, k, v, wq, wk, wv, mask=None):
    """Plain-JAX reference mirroring the PyTorch module semantics."""
    d = wq.shape[1]
    Q = jnp.einsum("bse,ed->bsd", q, wq)
    K = jnp.einsum("bse,ed->bsd", k, wk)
    V = jnp.einsum("bse,ed->bsd", v, wv)
    attn = jnp.einsum("bqd,bkd->bqk", Q, K) / math.sqrt(d)
    if mask is not None:
        attn = jnp.where(mask[None, :, :], -jnp.inf, attn)
    attn = jax.nn.softmax(attn, axis=-1)
    out = jnp.einsum("bqk,bkd->bqd", attn, V)
    return out, attn


def _make_inputs(key, bs, seq_len, emb_dim, d):
    kq, kk, kv, kwq, kwk, kwv = jax.random.split(key, 6)
    q = jax.random.normal(kq, (bs, seq_len, emb_dim), jnp.float32)
    k = jax.random.normal(kk, (bs, seq_len, emb_dim), jnp.float32)
    v = jax.random.normal(kv, (bs, seq_len, emb_dim), jnp.float32)
    # nn.Linear(emb_dim, d, bias=False) weights, stored transposed as [emb_dim, d].
    bound = 1.0 / math.sqrt(emb_dim)
    wq = jax.random.uniform(kwq, (emb_dim, d), jnp.float32, -bound, bound)
    wk = jax.random.uniform(kwk, (emb_dim, d), jnp.float32, -bound, bound)
    wv = jax.random.uniform(kwv, (emb_dim, d), jnp.float32, -bound, bound)
    return q, k, v, wq, wk, wv


if __name__ == "__main__":
    # Lane-dense shapes: bs=2, seq_len=256, emb_dim=128, h=1 -> d=128 (TQ=128, 2 q-tiles/batch).
    bs, seq_len, emb_dim, h = 2, 256, 128, 1
    d = emb_dim // h
    q, k, v, wq, wk, wv = _make_inputs(jax.random.PRNGKey(0), bs, seq_len, emb_dim, d)

    # 1) Fast bf16 path, no mask (module default).
    out, attn = attention_forward(q, k, v, wq, wk, wv, mask=None)
    jax.block_until_ready((out, attn))
    out_ref, attn_ref = reference_forward(q, k, v, wq, wk, wv, mask=None)
    assert jnp.allclose(out, out_ref, atol=2e-2, rtol=2e-2), "no-mask out mismatch"
    assert jnp.allclose(attn, attn_ref, atol=2e-2, rtol=2e-2), "no-mask attn mismatch"

    # 2) Fast bf16 path with an upper-triangular (causal-style) mask.
    mask = jnp.triu(jnp.ones((seq_len, seq_len), dtype=bool), k=1)
    out_m, attn_m = attention_forward(q, k, v, wq, wk, wv, mask=mask)
    jax.block_until_ready((out_m, attn_m))
    out_m_ref, attn_m_ref = reference_forward(q, k, v, wq, wk, wv, mask=mask)
    assert jnp.allclose(out_m, out_m_ref, atol=2e-2, rtol=2e-2), "masked out mismatch"
    assert jnp.allclose(attn_m, attn_m_ref, atol=2e-2, rtol=2e-2), "masked attn mismatch"

    # 3) Exact f32 path at tiny, non-128-aligned shapes (bs=2, S=8, E=d=32).
    q2, k2, v2, wq2, wk2, wv2 = _make_inputs(jax.random.PRNGKey(1), 2, 8, 32, 32)
    out2, attn2 = attention_forward(q2, k2, v2, wq2, wk2, wv2, mask=None, use_bf16=False)
    jax.block_until_ready((out2, attn2))
    out2_ref, attn2_ref = reference_forward(q2, k2, v2, wq2, wk2, wv2, mask=None)
    assert jnp.allclose(out2, out2_ref, atol=1e-4, rtol=1e-4), "f32 out mismatch"
    assert jnp.allclose(attn2, attn2_ref, atol=1e-4, rtol=1e-4), "f32 attn mismatch"

    print("KERNEL_OK")
</pallas_src>

<mosaic_0001>
module attributes {stable_mosaic.version = 11 : i64} {
  func.func @_attention_kernel(%arg0: i32, %arg1: i32, %arg2: memref<1x128x128xf32, #tpu.memory_space<vmem>>, %arg3: memref<1x256x128xf32, #tpu.memory_space<vmem>>, %arg4: memref<1x256x128xf32, #tpu.memory_space<vmem>>, %arg5: memref<128x128xf32, #tpu.memory_space<vmem>>, %arg6: memref<128x128xf32, #tpu.memory_space<vmem>>, %arg7: memref<128x128xf32, #tpu.memory_space<vmem>>, %arg8: memref<1x128x128xf32, #tpu.memory_space<vmem>>, %arg9: memref<1x128x256xf32, #tpu.memory_space<vmem>>, %arg10: memref<256x128xbf16, #tpu.memory_space<vmem>>, %arg11: memref<256x128xbf16, #tpu.memory_space<vmem>>) attributes {dimension_semantics = [#tpu.dimension_semantics<parallel>, #tpu.dimension_semantics<arbitrary>], iteration_bounds = array<i64: 2, 2>, scalar_prefetch = 0 : i64, scratch_operands = 2 : i64, tpu.core_type = #tpu.core_type<tc>, window_params = [{transform_indices = @transform_0, window_bounds = array<i64: 1, 128, 128>}, {transform_indices = @transform_1, window_bounds = array<i64: 1, 256, 128>}, {transform_indices = @transform_2, window_bounds = array<i64: 1, 256, 128>}, {pipeline_mode = #tpu.pipeline_mode<synchronous>, transform_indices = @transform_3, window_bounds = array<i64: 128, 128>}, {pipeline_mode = #tpu.pipeline_mode<synchronous>, transform_indices = @transform_4, window_bounds = array<i64: 128, 128>}, {pipeline_mode = #tpu.pipeline_mode<synchronous>, transform_indices = @transform_5, window_bounds = array<i64: 128, 128>}, {transform_indices = @transform_6, window_bounds = array<i64: 1, 128, 128>}, {transform_indices = @transform_7, window_bounds = array<i64: 1, 128, 256>}]} {
    %c0_i32 = arith.constant 0 : i32
    %0 = arith.cmpi eq, %arg1, %c0_i32 : i32
    %1 = arith.extui %0 : i1 to i32
    %c0_i32_0 = arith.constant 0 : i32
    %2 = arith.cmpi ne, %1, %c0_i32_0 : i32
    scf.if %2 {
      %c0_20 = arith.constant 0 : index
      %c0_21 = arith.constant 0 : index
      %c0_22 = arith.constant 0 : index
      %33 = vector.load %arg3[%c0_20, %c0_21, %c0_22] : memref<1x256x128xf32, #tpu.memory_space<vmem>>, vector<1x256x128xf32>
      %34 = vector.shape_cast %33 : vector<1x256x128xf32> to vector<256x128xf32>
      %35 = arith.truncf %34 : vector<256x128xf32> to vector<256x128xbf16>
      %c0_23 = arith.constant 0 : index
      %c0_24 = arith.constant 0 : index
      %c0_25 = arith.constant 0 : index
      %36 = vector.load %arg4[%c0_23, %c0_24, %c0_25] : memref<1x256x128xf32, #tpu.memory_space<vmem>>, vector<1x256x128xf32>
      %37 = vector.shape_cast %36 : vector<1x256x128xf32> to vector<256x128xf32>
      %38 = arith.truncf %37 : vector<256x128xf32> to vector<256x128xbf16>
      %c0_26 = arith.constant 0 : index
      %c0_27 = arith.constant 0 : index
      %39 = vector.load %arg6[%c0_26, %c0_27] : memref<128x128xf32, #tpu.memory_space<vmem>>, vector<128x128xf32>
      %40 = arith.truncf %39 : vector<128x128xf32> to vector<128x128xbf16>
      %cst_28 = arith.constant dense<0.000000e+00> : vector<256x128xf32>
      %41 = tpu.matmul %35, %40, %cst_28 {dimension_numbers = #tpu.dot_dimension_numbers<[1], [0], [0], [1], [0, 0, 1, 1], [], []>} : vector<256x128xbf16>, vector<128x128xbf16>, vector<256x128xf32> -> vector<256x128xf32>
      %42 = arith.truncf %41 : vector<256x128xf32> to vector<256x128xbf16>
      %c0_29 = arith.constant 0 : index
      %c0_30 = arith.constant 0 : index
      %43 = vector.load %arg10[%c0_29, %c0_30] : memref<256x128xbf16, #tpu.memory_space<vmem>>, vector<256x128xbf16>
      tpu.vector_store %arg10[%c0_29, %c0_30], %42 {strides = array<i32>} : memref<256x128xbf16, #tpu.memory_space<vmem>>, vector<256x128xbf16>,
      %c0_31 = arith.constant 0 : index
      %c0_32 = arith.constant 0 : index
      %44 = vector.load %arg7[%c0_31, %c0_32] : memref<128x128xf32, #tpu.memory_space<vmem>>, vector<128x128xf32>
      %45 = arith.truncf %44 : vector<128x128xf32> to vector<128x128xbf16>
      %cst_33 = arith.constant dense<0.000000e+00> : vector<256x128xf32>
      %46 = tpu.matmul %38, %45, %cst_33 {dimension_numbers = #tpu.dot_dimension_numbers<[1], [0], [0], [1], [0, 0, 1, 1], [], []>} : vector<256x128xbf16>, vector<128x128xbf16>, vector<256x128xf32> -> vector<256x128xf32>
      %47 = arith.truncf %46 : vector<256x128xf32> to vector<256x128xbf16>
      %c0_34 = arith.constant 0 : index
      %c0_35 = arith.constant 0 : index
      %48 = vector.load %arg11[%c0_34, %c0_35] : memref<256x128xbf16, #tpu.memory_space<vmem>>, vector<256x128xbf16>
      tpu.vector_store %arg11[%c0_34, %c0_35], %47 {strides = array<i32>} : memref<256x128xbf16, #tpu.memory_space<vmem>>, vector<256x128xbf16>,
    } else {
    }
    %c0 = arith.constant 0 : index
    %c0_1 = arith.constant 0 : index
    %c0_2 = arith.constant 0 : index
    %3 = vector.load %arg2[%c0, %c0_1, %c0_2] : memref<1x128x128xf32, #tpu.memory_space<vmem>>, vector<1x128x128xf32>
    %4 = vector.shape_cast %3 : vector<1x128x128xf32> to vector<128x128xf32>
    %5 = arith.truncf %4 : vector<128x128xf32> to vector<128x128xbf16>
    %c0_3 = arith.constant 0 : index
    %c0_4 = arith.constant 0 : index
    %6 = vector.load %arg5[%c0_3, %c0_4] : memref<128x128xf32, #tpu.memory_space<vmem>>, vector<128x128xf32>
    %7 = arith.truncf %6 : vector<128x128xf32> to vector<128x128xbf16>
    %cst = arith.constant dense<0.000000e+00> : vector<128x128xf32>
    %8 = tpu.matmul %5, %7, %cst {dimension_numbers = #tpu.dot_dimension_numbers<[1], [0], [0], [1], [0, 0, 1, 1], [], []>} : vector<128x128xbf16>, vector<128x128xbf16>, vector<128x128xf32> -> vector<128x128xf32>
    %cst_5 = arith.constant 0.0883883461 : f32
    %9 = vector.broadcast %cst_5 : f32 to vector<128x128xf32>
    %10 = arith.mulf %8, %9 : vector<128x128xf32>
    %11 = arith.truncf %10 : vector<128x128xf32> to vector<128x128xbf16>
    %c0_6 = arith.constant 0 : index
    %c0_7 = arith.constant 0 : index
    %12 = vector.load %arg10[%c0_6, %c0_7] : memref<256x128xbf16, #tpu.memory_space<vmem>>, vector<256x128xbf16>
    %cst_8 = arith.constant dense<0.000000e+00> : vector<128x256xf32>
    %13 = tpu.matmul %11, %12, %cst_8 {dimension_numbers = #tpu.dot_dimension_numbers<[1], [1], [0], [0], [0, 0, 1, 0], [], []>} : vector<128x128xbf16>, vector<256x128xbf16>, vector<128x256xf32> -> vector<128x256xf32>
    %cst_9 = arith.constant dense<0xFF800000> : vector<128xf32>
    %14 = vector.multi_reduction <maximumf>, %13, %cst_9 [1] : vector<128x256xf32> to vector<128xf32>
    %15 = vector.shape_cast %14 : vector<128xf32> to vector<128x1xf32>
    %16 = vector.broadcast %15 : vector<128x1xf32> to vector<128x256xf32>
    %17 = arith.subf %13, %16 : vector<128x256xf32>
    %18 = math.exp %17 : vector<128x256xf32>
    %cst_10 = arith.constant dense<0.000000e+00> : vector<128xf32>
    %19 = vector.multi_reduction <add>, %18, %cst_10 [1] : vector<128x256xf32> to vector<128xf32>
    %20 = vector.shape_cast %19 : vector<128xf32> to vector<128x1xf32>
    %21 = tpu.reciprocal %20 {approx = true} : vector<128x1xf32> -> vector<128x1xf32>
    %22 = vector.broadcast %21 : vector<128x1xf32> to vector<128x256xf32>
    %23 = arith.mulf %18, %22 : vector<128x256xf32>
    %c0_11 = arith.constant 0 : index
    %c0_12 = arith.constant 0 : index
    %c0_13 = arith.constant 0 : index
    %24 = vector.load %arg9[%c0_11, %c0_12, %c0_13] : memref<1x128x256xf32, #tpu.memory_space<vmem>>, vector<1x128x256xf32>
    %25 = vector.shape_cast %24 : vector<1x128x256xf32> to vector<128x256xf32>
    %26 = vector.shape_cast %23 : vector<128x256xf32> to vector<1x128x256xf32>
    tpu.vector_store %arg9[%c0_11, %c0_12, %c0_13], %26 {strides = array<i32>} : memref<1x128x256xf32, #tpu.memory_space<vmem>>, vector<1x128x256xf32>,
    %27 = arith.truncf %23 : vector<128x256xf32> to vector<128x256xbf16>
    %c0_14 = arith.constant 0 : index
    %c0_15 = arith.constant 0 : index
    %28 = vector.load %arg11[%c0_14, %c0_15] : memref<256x128xbf16, #tpu.memory_space<vmem>>, vector<256x128xbf16>
    %cst_16 = arith.constant dense<0.000000e+00> : vector<128x128xf32>
    %29 = tpu.matmul %27, %28, %cst_16 {dimension_numbers = #tpu.dot_dimension_numbers<[1], [0], [0], [1], [0, 0, 1, 1], [], []>} : vector<128x256xbf16>, vector<256x128xbf16>, vector<128x128xf32> -> vector<128x128xf32>
    %c0_17 = arith.constant 0 : index
    %c0_18 = arith.constant 0 : index
    %c0_19 = arith.constant 0 : index
    %30 = vector.load %arg8[%c0_17, %c0_18, %c0_19] : memref<1x128x128xf32, #tpu.memory_space<vmem>>, vector<1x128x128xf32>
    %31 = vector.shape_cast %30 : vector<1x128x128xf32> to vector<128x128xf32>
    %32 = vector.shape_cast %29 : vector<128x128xf32> to vector<1x128x128xf32>
    tpu.vector_store %arg8[%c0_17, %c0_18, %c0_19], %32 {strides = array<i32>} : memref<1x128x128xf32, #tpu.memory_space<vmem>>, vector<1x128x128xf32>,
    return
  }
  func.func @transform_0(%arg0: i32, %arg1: i32) -> (i32, i32, i32) {
    %c0_i32 = arith.constant 0 : i32
    %c0_i32_0 = arith.constant 0 : i32
    return %arg0, %arg1, %c0_i32 : i32, i32, i32
  }
  func.func @transform_1(%arg0: i32, %arg1: i32) -> (i32, i32, i32) {
    %c0_i32 = arith.constant 0 : i32
    %c0_i32_0 = arith.constant 0 : i32
    %c0_i32_1 = arith.constant 0 : i32
    return %arg0, %c0_i32, %c0_i32_0 : i32, i32, i32
  }
  func.func @transform_2(%arg0: i32, %arg1: i32) -> (i32, i32, i32) {
    %c0_i32 = arith.constant 0 : i32
    %c0_i32_0 = arith.constant 0 : i32
    %c0_i32_1 = arith.constant 0 : i32
    return %arg0, %c0_i32, %c0_i32_0 : i32, i32, i32
  }
  func.func @transform_3(%arg0: i32, %arg1: i32) -> (i32, i32) {
    %c0_i32 = arith.constant 0 : i32
    %c0_i32_0 = arith.constant 0 : i32
    %c0_i32_1 = arith.constant 0 : i32
    return %c0_i32, %c0_i32_0 : i32, i32
  }
  func.func @transform_4(%arg0: i32, %arg1: i32) -> (i32, i32) {
    %c0_i32 = arith.constant 0 : i32
    %c0_i32_0 = arith.constant 0 : i32
    %c0_i32_1 = arith.constant 0 : i32
    return %c0_i32, %c0_i32_0 : i32, i32
  }
  func.func @transform_5(%arg0: i32, %arg1: i32) -> (i32, i32) {
    %c0_i32 = arith.constant 0 : i32
    %c0_i32_0 = arith.constant 0 : i32
    %c0_i32_1 = arith.constant 0 : i32
    return %c0_i32, %c0_i32_0 : i32, i32
  }
  func.func @transform_6(%arg0: i32, %arg1: i32) -> (i32, i32, i32) {
    %c0_i32 = arith.constant 0 : i32
    %c0_i32_0 = arith.constant 0 : i32
    return %arg0, %arg1, %c0_i32 : i32, i32, i32
  }
  func.func @transform_7(%arg0: i32, %arg1: i32) -> (i32, i32, i32) {
    %c0_i32 = arith.constant 0 : i32
    %c0_i32_0 = arith.constant 0 : i32
    return %arg0, %arg1, %c0_i32 : i32, i32, i32
  }
}

</mosaic_0001>

<llo_original>
// kernel: tpu_custom_call.1
$region0: #{tpu_custom_call.1}
  #allocation0 [shape = 'u32[]', space=smem, size = 0x4, offset = 0x4, fixed_abs, tag = 'smem constant byte address 0x4 - core index']
  #allocation1 [shape = 'u32[144,128]{1,0:T(1,128)}', space=vmem, size = 0x12000, scoped, tag = 'internal scratch']
  #allocation2 [shape = 'bf16[256,128]{1,0:T(16,128)(2,1)}', space=vmem, size = 0x10000, scoped, tag = 'scratch operand']
  #allocation3 [shape = 'bf16[256,128]{1,0:T(16,128)(2,1)}', space=vmem, size = 0x10000, scoped, tag = 'scratch operand']
  %s0 = inlined_call_operand.hbm [shape: f32[2,256,128], index: 0, kind: input, shape index: {}]
  %s1 = inlined_call_operand.hbm [shape: f32[2,256,128], index: 1, kind: input, shape index: {}]
  %s2 = inlined_call_operand.hbm [shape: f32[2,256,128], index: 2, kind: input, shape index: {}]
  %s3 = inlined_call_operand.hbm [shape: f32[128,128], index: 3, kind: input, shape index: {}]
  %s4 = inlined_call_operand.hbm [shape: f32[128,128], index: 4, kind: input, shape index: {}]
  %s5 = inlined_call_operand.hbm [shape: f32[128,128], index: 5, kind: input, shape index: {}]
  %s6 = inlined_call_operand.hbm [shape: f32[2,256,128], index: 6, kind: output, shape index: {0}]
  %s7 = inlined_call_operand.hbm [shape: f32[2,256,256], index: 7, kind: output, shape index: {1}]
  %8 = xla_tuple %s6, %s7
  %s9 = sld [smem:[#allocation0]]
  $region93: #{tpu_custom_call.1} parent=0
    _
  %s11 = ssub.s32 1, %s9
  %s12 = scalar_select 0, %s11, %s9
  $region1: #{tpu_custom_call.1} parent=0
    #allocation4 [shape = 'u8[131072]{0}', space=vmem, size = 0x20000, scoped, tag = 'input window, operand 0']
    #allocation5 [shape = 's32[2]{0}', space=sflag, size = 0x8, scoped, tag = 'scoped memory for tpu_custom_call.1']
    #allocation6 [shape = 's32[2]{0}', space=sflag, size = 0x8, scoped, tag = 'scoped memory for tpu_custom_call.1']
    #allocation7 [shape = 'u8[262144]{0}', space=vmem, size = 0x40000, scoped, tag = 'input window, operand 1']
    #allocation8 [shape = 's32[2]{0}', space=sflag, size = 0x8, scoped, tag = 'scoped memory for tpu_custom_call.1']
    #allocation9 [shape = 'u8[262144]{0}', space=vmem, size = 0x40000, scoped, tag = 'input window, operand 2']
    #allocation10 [shape = 'u8[65536]{0}', space=vmem, size = 0x10000, scoped, tag = 'input window, operand 3, single buffered']
    #allocation11 [shape = 's32[1]{0}', space=sflag, size = 0x4, scoped, tag = 'scoped memory for tpu_custom_call.1']
    #allocation12 [shape = 'u8[65536]{0}', space=vmem, size = 0x10000, scoped, tag = 'input window, operand 4, single buffered']
    #allocation13 [shape = 'u8[65536]{0}', space=vmem, size = 0x10000, scoped, tag = 'input window, operand 5, single buffered']
    #allocation14 [shape = 's32[1]{0}', space=sflag, size = 0x4, scoped, tag = 'scoped memory for tpu_custom_call.1']
    #allocation15 [shape = 'u8[131072]{0}', space=vmem, size = 0x20000, scoped, tag = 'output window, operand 0']
    #allocation16 [shape = 'u8[262144]{0}', space=vmem, size = 0x40000, scoped, tag = 'output window, operand 1']
    #allocation17 [shape = 's32[2]{0}', space=sflag, size = 0x8, scoped, tag = 'scoped memory for tpu_custom_call.1']
    %13 = vsyncpa [#allocation5], 0
    %s14 = scalar_lea.sflag [#allocation5], 1
    %15 = vsyncpa %s14, 0
    %16 = vsyncpa [#allocation8], 0
    %s17 = scalar_lea.sflag [#allocation8], 1
    %18 = vsyncpa %s17, 0
    %19 = vsyncpa [#allocation11], 0
    %20 = vsyncpa [#allocation14], 0
    %21 = vsyncpa [#allocation6], 0
    %s22 = scalar_lea.sflag [#allocation6], 1
    %23 = vsyncpa %s22, 0
    %24 = vsyncpa [#allocation17], 0
    %s25 = scalar_lea.sflag [#allocation17], 1
    %26 = vsyncpa %s25, 0
    loop: start=0, step=1, limit=6
    $region2: #{tpu_custom_call.1} parent=1 // loop_pre_header
      _
    $region3: #{tpu_custom_call.1} parent=1 // loop_header
      %s28 = sphi 0, %s32
      %p29 = scmp.ge.s32.totalorder %s28, 6
      %s35 = sphi 0, %s47
      %s36 = sphi 0, %s43
      %s37 = sphi 0, %s35
      %s38 = sphi 0, %s36
      %s39 = sphi 0, %s37
      %s40 = sphi 0, %s38
      %s52 = sphi 0, %s54
      %s55 = sphi 0, %s52
      %s56 = sphi 0, %s55
      %s72 = sphi 0, %s56
      %s78 = sphi 0, %s80
      %s81 = sphi 0, %s78
      %s82 = sphi 0, %s81
      %s98 = sphi 0, %s82
      %s104 = sphi 0, %s106
      %s107 = sphi 0, %s104
      %s108 = sphi 0, %s107
      %s124 = sphi 0, %s108
      %s128 = sphi 0, %s128
      %s130 = sphi 0, %s128
      %s131 = sphi 0, %s130
      %s145 = sphi 0, %s131
      %s149 = sphi 0, %s149
      %s151 = sphi 0, %s149
      %s152 = sphi 0, %s151
      %s166 = sphi 0, %s152
      %s170 = sphi 0, %s170
      %s172 = sphi 0, %s170
      %s173 = sphi 0, %s172
      %s187 = sphi 0, %s173
      %s195 = sphi 0, %s197
      %s198 = sphi 0, %s195
      %s199 = sphi 0, %s198
      %s215 = sphi 0, %s199
      %s223 = sphi 0, %s225
      %s226 = sphi 0, %s223
      %s227 = sphi 0, %s226
      %s243 = sphi 0, %s227
    $region4: #{tpu_custom_call.1} parent=1 // loop_header_branch
      %31 = sbr.rel (%p29) target = $region8
    $region5: #{tpu_custom_call.1} parent=1 // loop_body
      %s33 = ssub.s32 %s28, 1
      %s34 = ssub.s32 %s28, 2
      %s41 = sadd.s32 1, %s36
      %p42 = scmp.ge.s32.totalorder %s41, 2
      %s43 = scalar_select %p42, 0, %s41
      %s44 = sadd.s32 1, %s35
      %s45 = scalar_select %p42, %s44, %s35
      %p46 = scmp.ge.s32.totalorder %s45, 2
      %s47 = scalar_select %p46, 0, %s45
      %s48 = ssub.s32 %s35, %s47
      %s49 = ssub.s32 %s36, %s43
      %s50 = sor.u32 %s48, %s49
      %p51 = scmp.eq.s32.totalorder %s50, 0
      %s53 = sadd.s32 %s52, 1
      %s54 = scalar_select %p51, %s52, %s53
      %p57 = pneg %p51
      %p58 = scmp.eq.s32.totalorder %s28, 3
      %p59 = por %p57, %p58
      %p60 = scmp.ne.s32.totalorder %s52, %s55
      %p61 = scmp.eq.s32.totalorder %s28, 0
      %p62 = por %p60, %p61
      %p63 = scmp.ne.s32.totalorder %s52, %s55
      %p64 = scmp.eq.s32.totalorder %s33, 3
      %p65 = por %p63, %p64
      %p66 = scmp.ne.s32.totalorder %s55, %s56
      %p67 = scmp.eq.s32.totalorder %s33, 0
      %p68 = por %p66, %p67
      %p69 = scmp.ne.s32.totalorder %s55, %s56
      %p70 = scmp.eq.s32.totalorder %s34, 3
      %p71 = por %p69, %p70
      %p73 = scmp.ne.s32.totalorder %s56, %s72
      %p74 = scmp.eq.s32.totalorder %s34, 0
      %p75 = por %p73, %p74
      %s76 = ssub.s32 %s35, %s47
      %p77 = scmp.eq.s32.totalorder %s76, 0
      %s79 = sadd.s32 %s78, 1
      %s80 = scalar_select %p77, %s78, %s79
      %p83 = pneg %p77
      %p84 = scmp.eq.s32.totalorder %s28, 3
      %p85 = por %p83, %p84
      %p86 = scmp.ne.s32.totalorder %s78, %s81
      %p87 = scmp.eq.s32.totalorder %s28, 0
      %p88 = por %p86, %p87
      %p89 = scmp.ne.s32.totalorder %s78, %s81
      %p90 = scmp.eq.s32.totalorder %s33, 3
      %p91 = por %p89, %p90
      %p92 = scmp.ne.s32.totalorder %s81, %s82
      %p93 = scmp.eq.s32.totalorder %s33, 0
      %p94 = por %p92, %p93
      %p95 = scmp.ne.s32.totalorder %s81, %s82
      %p96 = scmp.eq.s32.totalorder %s34, 3
      %p97 = por %p95, %p96
      %p99 = scmp.ne.s32.totalorder %s82, %s98
      %p100 = scmp.eq.s32.totalorder %s34, 0
      %p101 = por %p99, %p100
      %s102 = ssub.s32 %s35, %s47
      %p103 = scmp.eq.s32.totalorder %s102, 0
      %s105 = sadd.s32 %s104, 1
      %s106 = scalar_select %p103, %s104, %s105
      %p109 = pneg %p103
      %p110 = scmp.eq.s32.totalorder %s28, 3
      %p111 = por %p109, %p110
      %p112 = scmp.ne.s32.totalorder %s104, %s107
      %p113 = scmp.eq.s32.totalorder %s28, 0
      %p114 = por %p112, %p113
      %p115 = scmp.ne.s32.totalorder %s104, %s107
      %p116 = scmp.eq.s32.totalorder %s33, 3
      %p117 = por %p115, %p116
      %p118 = scmp.ne.s32.totalorder %s107, %s108
      %p119 = scmp.eq.s32.totalorder %s33, 0
      %p120 = por %p118, %p119
      %p121 = scmp.ne.s32.totalorder %s107, %s108
      %p122 = scmp.eq.s32.totalorder %s34, 3
      %p123 = por %p121, %p122
      %p125 = scmp.ne.s32.totalorder %s108, %s124
      %p126 = scmp.eq.s32.totalorder %s34, 0
      %p127 = por %p125, %p126
      %s129 = sadd.s32 %s128, 1
      %p132 = scmp.eq.s32.totalorder %s28, 3
      %p133 = scmp.ne.s32.totalorder %s128, %s130
      %p134 = scmp.eq.s32.totalorder %s28, 0
      %p135 = por %p133, %p134
      %p136 = scmp.ne.s32.totalorder %s128, %s130
      %p137 = scmp.eq.s32.totalorder %s33, 3
      %p138 = por %p136, %p137
      %p139 = scmp.ne.s32.totalorder %s130, %s131
      %p140 = scmp.eq.s32.totalorder %s33, 0
      %p141 = por %p139, %p140
      %p142 = scmp.ne.s32.totalorder %s130, %s131
      %p143 = scmp.eq.s32.totalorder %s34, 3
      %p144 = por %p142, %p143
      %p146 = scmp.ne.s32.totalorder %s131, %s145
      %p147 = scmp.eq.s32.totalorder %s34, 0
      %p148 = por %p146, %p147
      %s150 = sadd.s32 %s149, 1
      %p153 = scmp.eq.s32.totalorder %s28, 3
      %p154 = scmp.ne.s32.totalorder %s149, %s151
      %p155 = scmp.eq.s32.totalorder %s28, 0
      %p156 = por %p154, %p155
      %p157 = scmp.ne.s32.totalorder %s149, %s151
      %p158 = scmp.eq.s32.totalorder %s33, 3
      %p159 = por %p157, %p158
      %p160 = scmp.ne.s32.totalorder %s151, %s152
      %p161 = scmp.eq.s32.totalorder %s33, 0
      %p162 = por %p160, %p161
      %p163 = scmp.ne.s32.totalorder %s151, %s152
      %p164 = scmp.eq.s32.totalorder %s34, 3
      %p165 = por %p163, %p164
      %p167 = scmp.ne.s32.totalorder %s152, %s166
      %p168 = scmp.eq.s32.totalorder %s34, 0
      %p169 = por %p167, %p168
      %s171 = sadd.s32 %s170, 1
      %p174 = scmp.eq.s32.totalorder %s28, 3
      %p175 = scmp.ne.s32.totalorder %s170, %s172
      %p176 = scmp.eq.s32.totalorder %s28, 0
      %p177 = por %p175, %p176
      %p178 = scmp.ne.s32.totalorder %s170, %s172
      %p179 = scmp.eq.s32.totalorder %s33, 3
      %p180 = por %p178, %p179
      %p181 = scmp.ne.s32.totalorder %s172, %s173
      %p182 = scmp.eq.s32.totalorder %s33, 0
      %p183 = por %p181, %p182
      %p184 = scmp.ne.s32.totalorder %s172, %s173
      %p185 = scmp.eq.s32.totalorder %s34, 3
      %p186 = por %p184, %p185
      %p188 = scmp.ne.s32.totalorder %s173, %s187
      %p189 = scmp.eq.s32.totalorder %s34, 0
      %p190 = por %p188, %p189
      %s191 = ssub.s32 %s35, %s47
      %s192 = ssub.s32 %s36, %s43
      %s193 = sor.u32 %s191, %s192
      %p194 = scmp.eq.s32.totalorder %s193, 0
      %s196 = sadd.s32 %s195, 1
      %s197 = scalar_select %p194, %s195, %s196
      %p200 = pneg %p194
      %p201 = scmp.eq.s32.totalorder %s28, 3
      %p202 = por %p200, %p201
      %p203 = scmp.ne.s32.totalorder %s195, %s198
      %p204 = scmp.eq.s32.totalorder %s28, 0
      %p205 = por %p203, %p204
      %p206 = scmp.ne.s32.totalorder %s195, %s198
      %p207 = scmp.eq.s32.totalorder %s33, 3
      %p208 = por %p206, %p207
      %p209 = scmp.ne.s32.totalorder %s198, %s199
      %p210 = scmp.eq.s32.totalorder %s33, 0
      %p211 = por %p209, %p210
      %p212 = scmp.ne.s32.totalorder %s198, %s199
      %p213 = scmp.eq.s32.totalorder %s34, 3
      %p214 = por %p212, %p213
      %p216 = scmp.ne.s32.totalorder %s199, %s215
      %p217 = scmp.eq.s32.totalorder %s34, 0
      %p218 = por %p216, %p217
      %s219 = ssub.s32 %s35, %s47
      %s220 = ssub.s32 %s36, %s43
      %s221 = sor.u32 %s219, %s220
      %p222 = scmp.eq.s32.totalorder %s221, 0
      %s224 = sadd.s32 %s223, 1
      %s225 = scalar_select %p222, %s223, %s224
      %p228 = pneg %p222
      %p229 = scmp.eq.s32.totalorder %s28, 3
      %p230 = por %p228, %p229
      %p231 = scmp.ne.s32.totalorder %s223, %s226
      %p232 = scmp.eq.s32.totalorder %s28, 0
      %p233 = por %p231, %p232
      %p234 = scmp.ne.s32.totalorder %s223, %s226
      %p235 = scmp.eq.s32.totalorder %s33, 3
      %p236 = por %p234, %p235
      %p237 = scmp.ne.s32.totalorder %s226, %s227
      %p238 = scmp.eq.s32.totalorder %s33, 0
      %p239 = por %p237, %p238
      %p240 = scmp.ne.s32.totalorder %s226, %s227
      %p241 = scmp.eq.s32.totalorder %s34, 3
      %p242 = por %p240, %p241
      %p244 = scmp.ne.s32.totalorder %s227, %s243
      %p245 = scmp.eq.s32.totalorder %s34, 0
      %p246 = por %p244, %p245
      %p247 = scmp.le.s32.totalorder 1, %s28
      %p248 = scmp.lt.s32.totalorder %s28, 5
      %p249 = pnand %p247, %p248
      %p250 = pneg %p249
      // Predicated region
      $region9: #{tpu_custom_call.1} parent=5 // pred_check
        _
      $region10: #{tpu_custom_call.1} parent=5 // pred_check_branch
        %252 = sbr.rel (%p249) target = $region12
      $region11: #{tpu_custom_call.1} parent=5 // pred_region
        %s253 = ssub.s32 %s28, 1
        // Predicated region
        $region13: #{tpu_custom_call.1} parent=11 // pred_check
          %p254 = pneg %p141
        $region14: #{tpu_custom_call.1} parent=11 // pred_check_branch
          %256 = sbr.rel (%p254) target = $region16
        $region15: #{tpu_custom_call.1} parent=11 // pred_region
          %s258 = ssub.s32 2048, 2048
          %259 = vsyncadd [#allocation11], %s258
          %s260 = sshll.u32 [#allocation10], 4
          %s261 = int_to_ptr.vmem [resolvable:$true] %s260
          %266 = dma.hbm_to_vmem [thread:$0]  %s3, 2048, %s261, [#allocation11], 128, 128, 8
        $region16: #{tpu_custom_call.1} parent=11 // pred_fallthru
          _
        // Predicated region
        $region17: #{tpu_custom_call.1} parent=11 // pred_check
          %p267 = pneg %p162
        $region18: #{tpu_custom_call.1} parent=11 // pred_check_branch
          %269 = sbr.rel (%p267) target = $region20
        $region19: #{tpu_custom_call.1} parent=11 // pred_region
          %s271 = ssub.s32 2048, 2048
          %272 = vsyncadd [#allocation11], %s271
          %s273 = sshll.u32 [#allocation12], 4
          %s274 = int_to_ptr.vmem [resolvable:$true] %s273
          %279 = dma.hbm_to_vmem [thread:$0]  %s4, 2048, %s274, [#allocation11], 128, 128, 8
        $region20: #{tpu_custom_call.1} parent=11 // pred_fallthru
          _
        // Predicated region
        $region21: #{tpu_custom_call.1} parent=11 // pred_check
          %p280 = pneg %p183
        $region22: #{tpu_custom_call.1} parent=11 // pred_check_branch
          %282 = sbr.rel (%p280) target = $region24
        $region23: #{tpu_custom_call.1} parent=11 // pred_region
          %s284 = ssub.s32 2048, 2048
          %285 = vsyncadd [#allocation14], %s284
          %s286 = sshll.u32 [#allocation13], 4
          %s287 = int_to_ptr.vmem [resolvable:$true] %s286
          %292 = dma.hbm_to_vmem [thread:$0]  %s5, 2048, %s287, [#allocation14], 128, 128, 8
        $region24: #{tpu_custom_call.1} parent=11 // pred_fallthru
          _
      $region12: #{tpu_custom_call.1} parent=5 // pred_fallthru
        _
      %p293 = scmp.lt.s32.totalorder %s28, 4
      // Predicated region
      $region25: #{tpu_custom_call.1} parent=5 // pred_check
        %p294 = pneg %p293
      $region26: #{tpu_custom_call.1} parent=5 // pred_check_branch
        %296 = sbr.rel (%p294) target = $region28
      $region27: #{tpu_custom_call.1} parent=5 // pred_region
        // Predicated region
        $region29: #{tpu_custom_call.1} parent=27 // pred_check
          %p297 = pneg %p62
        $region30: #{tpu_custom_call.1} parent=27 // pred_check_branch
          %299 = sbr.rel (%p297) target = $region32
        $region31: #{tpu_custom_call.1} parent=27 // pred_region
          %s300 = sand.u32 %s52, 1
          %s301 = scalar_lea.sflag [#allocation5], %s300
          %s302 = sand.u32 %s52, 1
          %s303 = smul.addr %s302, 128
          %s304 = scalar_lea.vmem [#allocation4], %s303
          %s305 = smul.u32 16, %s36
          %s307 = ssub.s32 2048, 2048
          %308 = vsyncadd %s301, %s307
          %s309 = smul.addr %s35, 32
          %s310 = sadd.s32 %s305, %s309
          %s311 = smul.addr %s310, 128
          %s312 = scalar_lea.hbm %s0, %s311
          %s313 = sshll.u32 %s304, 4
          %s314 = int_to_ptr.vmem [resolvable:$true] %s313
          %319 = dma.hbm_to_vmem [thread:$0]  %s312, 2048, %s314, %s301, 128, 128, 8
        $region32: #{tpu_custom_call.1} parent=27 // pred_fallthru
          _
        // Predicated region
        $region33: #{tpu_custom_call.1} parent=27 // pred_check
          %p320 = pneg %p88
        $region34: #{tpu_custom_call.1} parent=27 // pred_check_branch
          %322 = sbr.rel (%p320) target = $region36
        $region35: #{tpu_custom_call.1} parent=27 // pred_region
          %s323 = sand.u32 %s28, 1
          %s324 = scalar_lea.sflag [#allocation8], %s323
          %s325 = sand.u32 %s78, 1
          %s326 = smul.addr %s325, 256
          %s327 = scalar_lea.vmem [#allocation7], %s326
          %s329 = ssub.s32 4096, 4096
          %330 = vsyncadd %s324, %s329
          %s331 = smul.addr %s35, 32
          %s332 = smul.addr %s331, 128
          %s333 = scalar_lea.hbm %s1, %s332
          %s334 = sshll.u32 %s327, 4
          %s335 = int_to_ptr.vmem [resolvable:$true] %s334
          %340 = dma.hbm_to_vmem [thread:$0]  %s333, 4096, %s335, %s324, 128, 128, 8
        $region36: #{tpu_custom_call.1} parent=27 // pred_fallthru
          _
        // Predicated region
        $region37: #{tpu_custom_call.1} parent=27 // pred_check
          %p341 = pneg %p114
        $region38: #{tpu_custom_call.1} parent=27 // pred_check_branch
          %343 = sbr.rel (%p341) target = $region40
        $region39: #{tpu_custom_call.1} parent=27 // pred_region
          %s344 = sand.u32 %s28, 1
          %s345 = scalar_lea.sflag [#allocation8], %s344
          %s346 = sand.u32 %s104, 1
          %s347 = smul.addr %s346, 256
          %s348 = scalar_lea.vmem [#allocation9], %s347
          %s350 = ssub.s32 4096, 4096
          %351 = vsyncadd %s345, %s350
          %s352 = smul.addr %s35, 32
          %s353 = smul.addr %s352, 128
          %s354 = scalar_lea.hbm %s2, %s353
          %s355 = sshll.u32 %s348, 4
          %s356 = int_to_ptr.vmem [resolvable:$true] %s355
          %361 = dma.hbm_to_vmem [thread:$0]  %s354, 4096, %s356, %s345, 128, 128, 8
        $region40: #{tpu_custom_call.1} parent=27 // pred_fallthru
          _
      $region28: #{tpu_custom_call.1} parent=5 // pred_fallthru
        _
      %p362 = scmp.le.s32.totalorder 1, %s28
      %p363 = scmp.lt.s32.totalorder %s28, 5
      %p364 = pnand %p362, %p363
      %p365 = pneg %p364
      // Predicated region
      $region41: #{tpu_custom_call.1} parent=5 // pred_check
        _
      $region42: #{tpu_custom_call.1} parent=5 // pred_check_branch
        %367 = sbr.rel (%p364) target = $region44
      $region43: #{tpu_custom_call.1} parent=5 // pred_region
        %s368 = ssub.s32 %s28, 1
        %s369 = sand.u32 %s55, 1
        %s370 = scalar_lea.sflag [#allocation5], %s369
        %s371 = sand.u32 %s55, 1
        %s372 = smul.addr %s371, 128
        %s373 = scalar_lea.vmem [#allocation4], %s372
        // Predicated region
        $region45: #{tpu_custom_call.1} parent=43 // pred_check
          %p374 = pneg %p68
        $region46: #{tpu_custom_call.1} parent=43 // pred_check_branch
          %376 = sbr.rel (%p374) target = $region48
        $region47: #{tpu_custom_call.1} parent=43 // pred_region
          %377 = dma.done %s370, 2048
        $region48: #{tpu_custom_call.1} parent=43 // pred_fallthru
          _
        %s378 = sand.u32 %s33, 1
        %s379 = scalar_lea.sflag [#allocation8], %s378
        %s380 = sand.u32 %s81, 1
        %s381 = smul.addr %s380, 256
        %s382 = scalar_lea.vmem [#allocation7], %s381
        // Predicated region
        $region49: #{tpu_custom_call.1} parent=43 // pred_check
          %p383 = pneg %p94
        $region50: #{tpu_custom_call.1} parent=43 // pred_check_branch
          %385 = sbr.rel (%p383) target = $region52
        $region51: #{tpu_custom_call.1} parent=43 // pred_region
          %386 = dma.done %s379, 4096
        $region52: #{tpu_custom_call.1} parent=43 // pred_fallthru
          _
        %s387 = sand.u32 %s33, 1
        %s388 = scalar_lea.sflag [#allocation8], %s387
        %s389 = sand.u32 %s107, 1
        %s390 = smul.addr %s389, 256
        %s391 = scalar_lea.vmem [#allocation9], %s390
        // Predicated region
        $region53: #{tpu_custom_call.1} parent=43 // pred_check
          %p392 = pneg %p120
        $region54: #{tpu_custom_call.1} parent=43 // pred_check_branch
          %394 = sbr.rel (%p392) target = $region56
        $region55: #{tpu_custom_call.1} parent=43 // pred_region
          %395 = dma.done %s388, 4096
        $region56: #{tpu_custom_call.1} parent=43 // pred_fallthru
          _
        // Predicated region
        $region57: #{tpu_custom_call.1} parent=43 // pred_check
          %p396 = pneg %p141
        $region58: #{tpu_custom_call.1} parent=43 // pred_check_branch
          %398 = sbr.rel (%p396) target = $region60
        $region59: #{tpu_custom_call.1} parent=43 // pred_region
          %399 = dma.done [#allocation11], 2048
        $region60: #{tpu_custom_call.1} parent=43 // pred_fallthru
          _
        // Predicated region
        $region61: #{tpu_custom_call.1} parent=43 // pred_check
          %p400 = pneg %p162
        $region62: #{tpu_custom_call.1} parent=43 // pred_check_branch
          %402 = sbr.rel (%p400) target = $region64
        $region63: #{tpu_custom_call.1} parent=43 // pred_region
          %403 = dma.done [#allocation11], 2048
        $region64: #{tpu_custom_call.1} parent=43 // pred_fallthru
          _
        // Predicated region
        $region65: #{tpu_custom_call.1} parent=43 // pred_check
          %p404 = pneg %p183
        $region66: #{tpu_custom_call.1} parent=43 // pred_check_branch
          %406 = sbr.rel (%p404) target = $region68
        $region67: #{tpu_custom_call.1} parent=43 // pred_region
          %407 = dma.done [#allocation14], 2048
        $region68: #{tpu_custom_call.1} parent=43 // pred_fallthru
          _
        %s408 = sand.u32 %s55, 1
        %s409 = scalar_lea.sflag [#allocation5], %s408
        %s410 = sand.u32 %s55, 1
        %s411 = smul.addr %s410, 128
        %s412 = scalar_lea.vmem [#allocation4], %s411
        %p413 = pneg %p68
        %p414 = pneg %p65
        %s415 = sand.u32 %s33, 1
        %s416 = scalar_lea.sflag [#allocation8], %s415
        %s417 = sand.u32 %s81, 1
        %s418 = smul.addr %s417, 256
        %s419 = scalar_lea.vmem [#allocation7], %s418
        %p420 = pneg %p94
        %p421 = pneg %p91
        %s422 = sand.u32 %s33, 1
        %s423 = scalar_lea.sflag [#allocation8], %s422
        %s424 = sand.u32 %s107, 1
        %s425 = smul.addr %s424, 256
        %s426 = scalar_lea.vmem [#allocation9], %s425
        %p427 = pneg %p120
        %p428 = pneg %p117
        %p429 = pneg %p141
        %p430 = pneg %p138
        %p431 = pneg %p162
        %p432 = pneg %p159
        %p433 = pneg %p183
        %p434 = pneg %p180
        %p435 = pneg %p211
        %p436 = pneg %p208
        %s437 = sand.u32 %s198, 1
        %s438 = scalar_lea.sflag [#allocation6], %s437
        %s439 = sand.u32 %s198, 1
        %s440 = smul.addr %s439, 128
        %s441 = scalar_lea.vmem [#allocation15], %s440
        %p442 = pneg %p239
        %p443 = pneg %p236
        %s444 = sand.u32 %s226, 1
        %s445 = scalar_lea.sflag [#allocation17], %s444
        %s446 = sand.u32 %s226, 1
        %s447 = smul.addr %s446, 256
        %s448 = scalar_lea.vmem [#allocation16], %s447
        %s449 = smul.u32 16, %s38
        %s450 = smul.u32 16, %s38
        %s451 = smul.u32 16, %s38
        %p453 = scmp.eq.s32.totalorder %s38, 0
        // Predicated region
        $region69: #{tpu_custom_call.1} parent=43 // pred_check
          %p454 = pneg %p453
        $region70: #{tpu_custom_call.1} parent=43 // pred_check_branch
          %456 = sbr.rel (%p454) target = $region72
        $region71: #{tpu_custom_call.1} parent=43 // pred_region
          %v457 = vld [vmem:[%s382] sm:$0xff]
          %v458 = vld [vmem:[%s382 + $0x8] sm:$0xff]
          %v459 = vld [vmem:[%s382 + $0x10] sm:$0xff]
          %v460 = vld [vmem:[%s382 + $0x18] sm:$0xff]
          %v461 = vld [vmem:[%s382 + $0x20] sm:$0xff]
          %v462 = vld [vmem:[%s382 + $0x28] sm:$0xff]
          %v463 = vld [vmem:[%s382 + $0x30] sm:$0xff]
          %v464 = vld [vmem:[%s382 + $0x38] sm:$0xff]
          %v465 = vld [vmem:[%s382 + $0x40] sm:$0xff]
          %v466 = vld [vmem:[%s382 + $0x48] sm:$0xff]
          %v467 = vld [vmem:[%s382 + $0x50] sm:$0xff]
          %v468 = vld [vmem:[%s382 + $0x58] sm:$0xff]
          %v469 = vld [vmem:[%s382 + $0x60] sm:$0xff]
          %v470 = vld [vmem:[%s382 + $0x68] sm:$0xff]
          %v471 = vld [vmem:[%s382 + $0x70] sm:$0xff]
          %v472 = vld [vmem:[%s382 + $0x78] sm:$0xff]
          %v473 = vld [vmem:[%s382 + $0x80] sm:$0xff]
          %v474 = vld [vmem:[%s382 + $0x88] sm:$0xff]
          %v475 = vld [vmem:[%s382 + $0x90] sm:$0xff]
          %v476 = vld [vmem:[%s382 + $0x98] sm:$0xff]
          %v477 = vld [vmem:[%s382 + $0xa0] sm:$0xff]
          %v478 = vld [vmem:[%s382 + $0xa8] sm:$0xff]
          %v479 = vld [vmem:[%s382 + $0xb0] sm:$0xff]
          %v480 = vld [vmem:[%s382 + $0xb8] sm:$0xff]
          %v481 = vld [vmem:[%s382 + $0xc0] sm:$0xff]
          %v482 = vld [vmem:[%s382 + $0xc8] sm:$0xff]
          %v483 = vld [vmem:[%s382 + $0xd0] sm:$0xff]
          %v484 = vld [vmem:[%s382 + $0xd8] sm:$0xff]
          %v485 = vld [vmem:[%s382 + $0xe0] sm:$0xff]
          %v486 = vld [vmem:[%s382 + $0xe8] sm:$0xff]
          %v487 = vld [vmem:[%s382 + $0xf0] sm:$0xff]
          %v488 = vld [vmem:[%s382 + $0xf8] sm:$0xff]
          %v489 = vpack.c.bf16 %v458, %v457
          %v490 = vpack.c.bf16 %v460, %v459
          %v491 = vpack.c.bf16 %v462, %v461
          %v492 = vpack.c.bf16 %v464, %v463
          %v493 = vpack.c.bf16 %v466, %v465
          %v494 = vpack.c.bf16 %v468, %v467
          %v495 = vpack.c.bf16 %v470, %v469
          %v496 = vpack.c.bf16 %v472, %v471
          %v497 = vpack.c.bf16 %v474, %v473
          %v498 = vpack.c.bf16 %v476, %v475
          %v499 = vpack.c.bf16 %v478, %v477
          %v500 = vpack.c.bf16 %v480, %v479
          %v501 = vpack.c.bf16 %v482, %v481
          %v502 = vpack.c.bf16 %v484, %v483
          %v503 = vpack.c.bf16 %v486, %v485
          %v504 = vpack.c.bf16 %v488, %v487
          %v505 = vld [vmem:[%s391] sm:$0xff]
          %v506 = vld [vmem:[%s391 + $0x8] sm:$0xff]
          %v507 = vld [vmem:[%s391 + $0x10] sm:$0xff]
          %v508 = vld [vmem:[%s391 + $0x18] sm:$0xff]
          %v509 = vld [vmem:[%s391 + $0x20] sm:$0xff]
          %v510 = vld [vmem:[%s391 + $0x28] sm:$0xff]
          %v511 = vld [vmem:[%s391 + $0x30] sm:$0xff]
          %v512 = vld [vmem:[%s391 + $0x38] sm:$0xff]
          %v513 = vld [vmem:[%s391 + $0x40] sm:$0xff]
          %v514 = vld [vmem:[%s391 + $0x48] sm:$0xff]
          %v515 = vld [vmem:[%s391 + $0x50] sm:$0xff]
          %v516 = vld [vmem:[%s391 + $0x58] sm:$0xff]
          %v517 = vld [vmem:[%s391 + $0x60] sm:$0xff]
          %v518 = vld [vmem:[%s391 + $0x68] sm:$0xff]
          %v519 = vld [vmem:[%s391 + $0x70] sm:$0xff]
          %v520 = vld [vmem:[%s391 + $0x78] sm:$0xff]
          %v521 = vld [vmem:[%s391 + $0x80] sm:$0xff]
          %v522 = vld [vmem:[%s391 + $0x88] sm:$0xff]
          %v523 = vld [vmem:[%s391 + $0x90] sm:$0xff]
          %v524 = vld [vmem:[%s391 + $0x98] sm:$0xff]
          %v525 = vld [vmem:[%s391 + $0xa0] sm:$0xff]
          %v526 = vld [vmem:[%s391 + $0xa8] sm:$0xff]
          %v527 = vld [vmem:[%s391 + $0xb0] sm:$0xff]
          %v528 = vld [vmem:[%s391 + $0xb8] sm:$0xff]
          %v529 = vld [vmem:[%s391 + $0xc0] sm:$0xff]
          %v530 = vld [vmem:[%s391 + $0xc8] sm:$0xff]
          %v531 = vld [vmem:[%s391 + $0xd0] sm:$0xff]
          %v532 = vld [vmem:[%s391 + $0xd8] sm:$0xff]
          %v533 = vld [vmem:[%s391 + $0xe0] sm:$0xff]
          %v534 = vld [vmem:[%s391 + $0xe8] sm:$0xff]
          %v535 = vld [vmem:[%s391 + $0xf0] sm:$0xff]
          %v536 = vld [vmem:[%s391 + $0xf8] sm:$0xff]
          %v537 = vpack.c.bf16 %v506, %v505
          %v538 = vpack.c.bf16 %v508, %v507
          %v539 = vpack.c.bf16 %v510, %v509
          %v540 = vpack.c.bf16 %v512, %v511
          %v541 = vpack.c.bf16 %v514, %v513
          %v542 = vpack.c.bf16 %v516, %v515
          %v543 = vpack.c.bf16 %v518, %v517
          %v544 = vpack.c.bf16 %v520, %v519
          %v545 = vpack.c.bf16 %v522, %v521
          %v546 = vpack.c.bf16 %v524, %v523
          %v547 = vpack.c.bf16 %v526, %v525
          %v548 = vpack.c.bf16 %v528, %v527
          %v549 = vpack.c.bf16 %v530, %v529
          %v550 = vpack.c.bf16 %v532, %v531
          %v551 = vpack.c.bf16 %v534, %v533
          %v552 = vpack.c.bf16 %v536, %v535
          %v553 = vld [vmem:[#allocation12] sm:$0xff]
          %v554 = vld [vmem:[#allocation12 + $0x8] sm:$0xff]
          %v555 = vld [vmem:[#allocation12 + $0x10] sm:$0xff]
          %v556 = vld [vmem:[#allocation12 + $0x18] sm:$0xff]
          %v557 = vld [vmem:[#allocation12 + $0x20] sm:$0xff]
          %v558 = vld [vmem:[#allocation12 + $0x28] sm:$0xff]
          %v559 = vld [vmem:[#allocation12 + $0x30] sm:$0xff]
          %v560 = vld [vmem:[#allocation12 + $0x38] sm:$0xff]
          %v561 = vld [vmem:[#allocation12 + $0x40] sm:$0xff]
          %v562 = vld [vmem:[#allocation12 + $0x48] sm:$0xff]
          %v563 = vld [vmem:[#allocation12 + $0x50] sm:$0xff]
          %v564 = vld [vmem:[#allocation12 + $0x58] sm:$0xff]
          %v565 = vld [vmem:[#allocation12 + $0x60] sm:$0xff]
          %v566 = vld [vmem:[#allocation12 + $0x68] sm:$0xff]
          %v567 = vld [vmem:[#allocation12 + $0x70] sm:$0xff]
          %v568 = vld [vmem:[#allocation12 + $0x78] sm:$0xff]
          %v569 = vpack.c.bf16 %v554, %v553
          %v570 = vpack.c.bf16 %v556, %v555
          %v571 = vpack.c.bf16 %v558, %v557
          %v572 = vpack.c.bf16 %v560, %v559
          %v573 = vpack.c.bf16 %v562, %v561
          %v574 = vpack.c.bf16 %v564, %v563
          %v575 = vpack.c.bf16 %v566, %v565
          %v576 = vpack.c.bf16 %v568, %v567
          %577 = vmatprep.subr.bf16.mxu0 0
          %578 = vmatpush1.bf16.msra.mxu0 %v569
          %579 = vmatprep.subr.bf16.mxu0 0
          %580 = vmatpush1.bf16.msra.mxu0 %v570
          %581 = vmatprep.subr.bf16.mxu0 0
          %582 = vmatpush1.bf16.msra.mxu0 %v571
          %583 = vmatprep.subr.bf16.mxu0 0
          %584 = vmatpush1.bf16.msra.mxu0 %v572
          %585 = vmatprep.subr.bf16.mxu0 0
          %586 = vmatpush1.bf16.msra.mxu0 %v573
          %587 = vmatprep.subr.bf16.mxu0 0
          %588 = vmatpush1.bf16.msra.mxu0 %v574
          %589 = vmatprep.subr.bf16.mxu0 0
          %590 = vmatpush1.bf16.msra.mxu0 %v575
          %591 = vmatprep.subr.bf16.mxu0 0
          %592 = vmatpush1.bf16.msra.mxu0 %v576
          %593 = vmatprep.subr.bf16.mxu0 0
          %594 = vmatpush1.bf16.msra.mxu0 0
          %595 = vmatprep.subr.bf16.mxu0 0
          %596 = vmatpush1.bf16.msra.mxu0 0
          %597 = vmatprep.subr.bf16.mxu0 0
          %598 = vmatpush1.bf16.msra.mxu0 0
          %599 = vmatprep.subr.bf16.mxu0 0
          %600 = vmatpush1.bf16.msra.mxu0 0
          %601 = vmatprep.subr.bf16.mxu0 0
          %602 = vmatpush1.bf16.msra.mxu0 0
          %603 = vmatprep.subr.bf16.mxu0 0
          %604 = vmatpush1.bf16.msra.mxu0 0
          %605 = vmatprep.subr.bf16.mxu0 0
          %606 = vmatpush1.bf16.msra.mxu0 0
          %607 = vmatprep.subr.bf16.mxu0 0
          %608 = vmatpush1.bf16.msra.mxu0 0
          %609 = vmatprep.mubr.bf16.mxu0 0
          %610 = vmatmul.mubr.bf16.gmra.mrb[0].mxu0 %v489
          %v611 = vpop.f32.mrb[0].mxu0
          %v612 = vadd.f32 0.0, %v611
          %v613 = vpop.f32.mrb[0].mxu0
          %v614 = vpop.f32.mrb[0].mxu0
          %v615 = vadd.f32 0.0, %v614
          %v616 = vpop.f32.mrb[0].mxu0
          %617 = vmatprep.mubr.bf16.mxu0 0
          %618 = vmatmul.mubr.bf16.gmra.mrb[0].mxu0 %v490
          %v619 = vpop.f32.mrb[0].mxu0
          %v620 = vadd.f32 0.0, %v619
          %v621 = vpop.f32.mrb[0].mxu0
          %v622 = vpop.f32.mrb[0].mxu0
          %v623 = vadd.f32 0.0, %v622
          %v624 = vpop.f32.mrb[0].mxu0
          %625 = vmatprep.mubr.bf16.mxu0 0
          %626 = vmatmul.mubr.bf16.gmra.mrb[0].mxu0 %v491
          %v627 = vpop.f32.mrb[0].mxu0
          %v628 = vadd.f32 0.0, %v627
          %v629 = vpop.f32.mrb[0].mxu0
          %v630 = vpop.f32.mrb[0].mxu0
          %v631 = vadd.f32 0.0, %v630
          %v632 = vpop.f32.mrb[0].mxu0
          %633 = vmatprep.mubr.bf16.mxu0 0
          %634 = vmatmul.mubr.bf16.gmra.mrb[0].mxu0 %v492
          %v635 = vpop.f32.mrb[0].mxu0
          %v636 = vadd.f32 0.0, %v635
          %v637 = vpop.f32.mrb[0].mxu0
          %v638 = vpop.f32.mrb[0].mxu0
          %v639 = vadd.f32 0.0, %v638
          %v640 = vpop.f32.mrb[0].mxu0
          %641 = vmatprep.mubr.bf16.mxu0 0
          %642 = vmatmul.mubr.bf16.gmra.mrb[0].mxu0 %v493
          %v643 = vpop.f32.mrb[0].mxu0
          %v644 = vadd.f32 0.0, %v643
          %v645 = vpop.f32.mrb[0].mxu0
          %v646 = vpop.f32.mrb[0].mxu0
          %v647 = vadd.f32 0.0, %v646
          %v648 = vpop.f32.mrb[0].mxu0
          %649 = vmatprep.mubr.bf16.mxu0 0
          %650 = vmatmul.mubr.bf16.gmra.mrb[0].mxu0 %v494
          %v651 = vpop.f32.mrb[0].mxu0
          %v652 = vadd.f32 0.0, %v651
          %v653 = vpop.f32.mrb[0].mxu0
          %v654 = vpop.f32.mrb[0].mxu0
          %v655 = vadd.f32 0.0, %v654
          %v656 = vpop.f32.mrb[0].mxu0
          %657 = vmatprep.mubr.bf16.mxu0 0
          %658 = vmatmul.mubr.bf16.gmra.mrb[0].mxu0 %v495
          %v659 = vpop.f32.mrb[0].mxu0
          %v660 = vadd.f32 0.0, %v659
          %v661 = vpop.f32.mrb[0].mxu0
          %v662 = vpop.f32.mrb[0].mxu0
          %v663 = vadd.f32 0.0, %v662
          %v664 = vpop.f32.mrb[0].mxu0
          %665 = vmatprep.mubr.bf16.mxu0 0
          %666 = vmatmul.mubr.bf16.gmra.mrb[0].mxu0 %v496
          %v667 = vpop.f32.mrb[0].mxu0
          %v668 = vadd.f32 0.0, %v667
          %v669 = vpop.f32.mrb[0].mxu0
          %v670 = vpop.f32.mrb[0].mxu0
          %v671 = vadd.f32 0.0, %v670
          %v672 = vpop.f32.mrb[0].mxu0
          %673 = vmatprep.mubr.bf16.mxu0 0
          %674 = vmatmul.mubr.bf16.gmra.mrb[0].mxu0 %v497
          %v675 = vpop.f32.mrb[0].mxu0
          %v676 = vadd.f32 0.0, %v675
          %v677 = vpop.f32.mrb[0].mxu0
          %v678 = vpop.f32.mrb[0].mxu0
          %v679 = vadd.f32 0.0, %v678
          %v680 = vpop.f32.mrb[0].mxu0
          %681 = vmatprep.mubr.bf16.mxu0 0
          %682 = vmatmul.mubr.bf16.gmra.mrb[0].mxu0 %v498
          %v683 = vpop.f32.mrb[0].mxu0
          %v684 = vadd.f32 0.0, %v683
          %v685 = vpop.f32.mrb[0].mxu0
          %v686 = vpop.f32.mrb[0].mxu0
          %v687 = vadd.f32 0.0, %v686
          %v688 = vpop.f32.mrb[0].mxu0
          %689 = vmatprep.mubr.bf16.mxu0 0
          %690 = vmatmul.mubr.bf16.gmra.mrb[0].mxu0 %v499
          %v691 = vpop.f32.mrb[0].mxu0
          %v692 = vadd.f32 0.0, %v691
          %v693 = vpop.f32.mrb[0].mxu0
          %v694 = vpop.f32.mrb[0].mxu0
          %v695 = vadd.f32 0.0, %v694
          %v696 = vpop.f32.mrb[0].mxu0
          %697 = vmatprep.mubr.bf16.mxu0 0
          %698 = vmatmul.mubr.bf16.gmra.mrb[0].mxu0 %v500
          %v699 = vpop.f32.mrb[0].mxu0
          %v700 = vadd.f32 0.0, %v699
          %v701 = vpop.f32.mrb[0].mxu0
          %v702 = vpop.f32.mrb[0].mxu0
          %v703 = vadd.f32 0.0, %v702
          %v704 = vpop.f32.mrb[0].mxu0
          %705 = vmatprep.mubr.bf16.mxu0 0
          %706 = vmatmul.mubr.bf16.gmra.mrb[0].mxu0 %v501
          %v707 = vpop.f32.mrb[0].mxu0
          %v708 = vadd.f32 0.0, %v707
          %v709 = vpop.f32.mrb[0].mxu0
          %v710 = vpop.f32.mrb[0].mxu0
          %v711 = vadd.f32 0.0, %v710
          %v712 = vpop.f32.mrb[0].mxu0
          %713 = vmatprep.mubr.bf16.mxu0 0
          %714 = vmatmul.mubr.bf16.gmra.mrb[0].mxu0 %v502
          %v715 = vpop.f32.mrb[0].mxu0
          %v716 = vadd.f32 0.0, %v715
          %v717 = vpop.f32.mrb[0].mxu0
          %v718 = vpop.f32.mrb[0].mxu0
          %v719 = vadd.f32 0.0, %v718
          %v720 = vpop.f32.mrb[0].mxu0
          %721 = vmatprep.mubr.bf16.mxu0 0
          %722 = vmatmul.mubr.bf16.gmra.mrb[0].mxu0 %v503
          %v723 = vpop.f32.mrb[0].mxu0
          %v724 = vadd.f32 0.0, %v723
          %v725 = vpop.f32.mrb[0].mxu0
          %v726 = vpop.f32.mrb[0].mxu0
          %v727 = vadd.f32 0.0, %v726
          %v728 = vpop.f32.mrb[0].mxu0
          %729 = vmatprep.mubr.bf16.mxu0 0
          %730 = vmatmul.mubr.bf16.gmra.mrb[0].mxu0 %v504
          %v731 = vpop.f32.mrb[0].mxu0
          %v732 = vadd.f32 0.0, %v731
          %v733 = vpop.f32.mrb[0].mxu0
          %v734 = vpop.f32.mrb[0].mxu0
          %v735 = vadd.f32 0.0, %v734
          %v736 = vpop.f32.mrb[0].mxu0
          %737 = vdwg.mxu0
          %v738 = vpack.c.bf16 %v615, %v612
          %v739 = vpack.c.bf16 %v623, %v620
          %v740 = vpack.c.bf16 %v631, %v628
          %v741 = vpack.c.bf16 %v639, %v636
          %v742 = vpack.c.bf16 %v647, %v644
          %v743 = vpack.c.bf16 %v655, %v652
          %v744 = vpack.c.bf16 %v663, %v660
          %v745 = vpack.c.bf16 %v671, %v668
          %v746 = vpack.c.bf16 %v679, %v676
          %v747 = vpack.c.bf16 %v687, %v684
          %v748 = vpack.c.bf16 %v695, %v692
          %v749 = vpack.c.bf16 %v703, %v700
          %v750 = vpack.c.bf16 %v711, %v708
          %v751 = vpack.c.bf16 %v719, %v716
          %v752 = vpack.c.bf16 %v727, %v724
          %v753 = vpack.c.bf16 %v735, %v732
          %754 = vst [vmem:[#allocation2] sm:$0xff] %v738
          %755 = vst [vmem:[#allocation2 + $0x8] sm:$0xff] %v739
          %756 = vst [vmem:[#allocation2 + $0x10] sm:$0xff] %v740
          %757 = vst [vmem:[#allocation2 + $0x18] sm:$0xff] %v741
          %758 = vst [vmem:[#allocation2 + $0x20] sm:$0xff] %v742
          %759 = vst [vmem:[#allocation2 + $0x28] sm:$0xff] %v743
          %760 = vst [vmem:[#allocation2 + $0x30] sm:$0xff] %v744
          %761 = vst [vmem:[#allocation2 + $0x38] sm:$0xff] %v745
          %762 = vst [vmem:[#allocation2 + $0x40] sm:$0xff] %v746
          %763 = vst [vmem:[#allocation2 + $0x48] sm:$0xff] %v747
          %764 = vst [vmem:[#allocation2 + $0x50] sm:$0xff] %v748
          %765 = vst [vmem:[#allocation2 + $0x58] sm:$0xff] %v749
          %766 = vst [vmem:[#allocation2 + $0x60] sm:$0xff] %v750
          %767 = vst [vmem:[#allocation2 + $0x68] sm:$0xff] %v751
          %768 = vst [vmem:[#allocation2 + $0x70] sm:$0xff] %v752
          %769 = vst [vmem:[#allocation2 + $0x78] sm:$0xff] %v753
          %v770 = vld [vmem:[#allocation13] sm:$0xff]
          %v771 = vld [vmem:[#allocation13 + $0x8] sm:$0xff]
          %v772 = vld [vmem:[#allocation13 + $0x10] sm:$0xff]
          %v773 = vld [vmem:[#allocation13 + $0x18] sm:$0xff]
          %v774 = vld [vmem:[#allocation13 + $0x20] sm:$0xff]
          %v775 = vld [vmem:[#allocation13 + $0x28] sm:$0xff]
          %v776 = vld [vmem:[#allocation13 + $0x30] sm:$0xff]
          %v777 = vld [vmem:[#allocation13 + $0x38] sm:$0xff]
          %v778 = vld [vmem:[#allocation13 + $0x40] sm:$0xff]
          %v779 = vld [vmem:[#allocation13 + $0x48] sm:$0xff]
          %v780 = vld [vmem:[#allocation13 + $0x50] sm:$0xff]
          %v781 = vld [vmem:[#allocation13 + $0x58] sm:$0xff]
          %v782 = vld [vmem:[#allocation13 + $0x60] sm:$0xff]
          %v783 = vld [vmem:[#allocation13 + $0x68] sm:$0xff]
          %v784 = vld [vmem:[#allocation13 + $0x70] sm:$0xff]
          %v785 = vld [vmem:[#allocation13 + $0x78] sm:$0xff]
          %v786 = vpack.c.bf16 %v771, %v770
          %v787 = vpack.c.bf16 %v773, %v772
          %v788 = vpack.c.bf16 %v775, %v774
          %v789 = vpack.c.bf16 %v777, %v776
          %v790 = vpack.c.bf16 %v779, %v778
          %v791 = vpack.c.bf16 %v781, %v780
          %v792 = vpack.c.bf16 %v783, %v782
          %v793 = vpack.c.bf16 %v785, %v784
          %794 = vmatprep.subr.bf16.mxu0 0
          %795 = vmatpush1.bf16.msra.mxu0 %v786
          %796 = vmatprep.subr.bf16.mxu0 0
          %797 = vmatpush1.bf16.msra.mxu0 %v787
          %798 = vmatprep.subr.bf16.mxu0 0
          %799 = vmatpush1.bf16.msra.mxu0 %v788
          %800 = vmatprep.subr.bf16.mxu0 0
          %801 = vmatpush1.bf16.msra.mxu0 %v789
          %802 = vmatprep.subr.bf16.mxu0 0
          %803 = vmatpush1.bf16.msra.mxu0 %v790
          %804 = vmatprep.subr.bf16.mxu0 0
          %805 = vmatpush1.bf16.msra.mxu0 %v791
          %806 = vmatprep.subr.bf16.mxu0 0
          %807 = vmatpush1.bf16.msra.mxu0 %v792
          %808 = vmatprep.subr.bf16.mxu0 0
          %809 = vmatpush1.bf16.msra.mxu0 %v793
          %810 = vmatprep.subr.bf16.mxu0 0
          %811 = vmatpush1.bf16.msra.mxu0 0
          %812 = vmatprep.subr.bf16.mxu0 0
          %813 = vmatpush1.bf16.msra.mxu0 0
          %814 = vmatprep.subr.bf16.mxu0 0
          %815 = vmatpush1.bf16.msra.mxu0 0
          %816 = vmatprep.subr.bf16.mxu0 0
          %817 = vmatpush1.bf16.msra.mxu0 0
          %818 = vmatprep.subr.bf16.mxu0 0
          %819 = vmatpush1.bf16.msra.mxu0 0
          %820 = vmatprep.subr.bf16.mxu0 0
          %821 = vmatpush1.bf16.msra.mxu0 0
          %822 = vmatprep.subr.bf16.mxu0 0
          %823 = vmatpush1.bf16.msra.mxu0 0
          %824 = vmatprep.subr.bf16.mxu0 0
          %825 = vmatpush1.bf16.msra.mxu0 0
          %826 = vmatprep.mubr.bf16.mxu0 0
          %827 = vmatmul.mubr.bf16.gmra.mrb[0].mxu0 %v537
          %v828 = vpop.f32.mrb[0].mxu0
          %v829 = vadd.f32 0.0, %v828
          %v830 = vpop.f32.mrb[0].mxu0
          %v831 = vpop.f32.mrb[0].mxu0
          %v832 = vadd.f32 0.0, %v831
          %v833 = vpop.f32.mrb[0].mxu0
          %834 = vmatprep.mubr.bf16.mxu0 0
          %835 = vmatmul.mubr.bf16.gmra.mrb[0].mxu0 %v538
          %v836 = vpop.f32.mrb[0].mxu0
          %v837 = vadd.f32 0.0, %v836
          %v838 = vpop.f32.mrb[0].mxu0
          %v839 = vpop.f32.mrb[0].mxu0
          %v840 = vadd.f32 0.0, %v839
          %v841 = vpop.f32.mrb[0].mxu0
          %842 = vmatprep.mubr.bf16.mxu0 0
          %843 = vmatmul.mubr.bf16.gmra.mrb[0].mxu0 %v539
          %v844 = vpop.f32.mrb[0].mxu0
          %v845 = vadd.f32 0.0, %v844
          %v846 = vpop.f32.mrb[0].mxu0
          %v847 = vpop.f32.mrb[0].mxu0
          %v848 = vadd.f32 0.0, %v847
          %v849 = vpop.f32.mrb[0].mxu0
          %850 = vmatprep.mubr.bf16.mxu0 0
          %851 = vmatmul.mubr.bf16.gmra.mrb[0].mxu0 %v540
          %v852 = vpop.f32.mrb[0].mxu0
          %v853 = vadd.f32 0.0, %v852
          %v854 = vpop.f32.mrb[0].mxu0
          %v855 = vpop.f32.mrb[0].mxu0
          %v856 = vadd.f32 0.0, %v855
          %v857 = vpop.f32.mrb[0].mxu0
          %858 = vmatprep.mubr.bf16.mxu0 0
          %859 = vmatmul.mubr.bf16.gmra.mrb[0].mxu0 %v541
          %v860 = vpop.f32.mrb[0].mxu0
          %v861 = vadd.f32 0.0, %v860
          %v862 = vpop.f32.mrb[0].mxu0
          %v863 = vpop.f32.mrb[0].mxu0
          %v864 = vadd.f32 0.0, %v863
          %v865 = vpop.f32.mrb[0].mxu0
          %866 = vmatprep.mubr.bf16.mxu0 0
          %867 = vmatmul.mubr.bf16.gmra.mrb[0].mxu0 %v542
          %v868 = vpop.f32.mrb[0].mxu0
          %v869 = vadd.f32 0.0, %v868
          %v870 = vpop.f32.mrb[0].mxu0
          %v871 = vpop.f32.mrb[0].mxu0
          %v872 = vadd.f32 0.0, %v871
          %v873 = vpop.f32.mrb[0].mxu0
          %874 = vmatprep.mubr.bf16.mxu0 0
          %875 = vmatmul.mubr.bf16.gmra.mrb[0].mxu0 %v543
          %v876 = vpop.f32.mrb[0].mxu0
          %v877 = vadd.f32 0.0, %v876
          %v878 = vpop.f32.mrb[0].mxu0
          %v879 = vpop.f32.mrb[0].mxu0
          %v880 = vadd.f32 0.0, %v879
          %v881 = vpop.f32.mrb[0].mxu0
          %882 = vmatprep.mubr.bf16.mxu0 0
          %883 = vmatmul.mubr.bf16.gmra.mrb[0].mxu0 %v544
          %v884 = vpop.f32.mrb[0].mxu0
          %v885 = vadd.f32 0.0, %v884
          %v886 = vpop.f32.mrb[0].mxu0
          %v887 = vpop.f32.mrb[0].mxu0
          %v888 = vadd.f32 0.0, %v887
          %v889 = vpop.f32.mrb[0].mxu0
          %890 = vmatprep.mubr.bf16.mxu0 0
          %891 = vmatmul.mubr.bf16.gmra.mrb[0].mxu0 %v545
          %v892 = vpop.f32.mrb[0].mxu0
          %v893 = vadd.f32 0.0, %v892
          %v894 = vpop.f32.mrb[0].mxu0
          %v895 = vpop.f32.mrb[0].mxu0
          %v896 = vadd.f32 0.0, %v895
          %v897 = vpop.f32.mrb[0].mxu0
          %898 = vmatprep.mubr.bf16.mxu0 0
          %899 = vmatmul.mubr.bf16.gmra.mrb[0].mxu0 %v546
          %v900 = vpop.f32.mrb[0].mxu0
          %v901 = vadd.f32 0.0, %v900
          %v902 = vpop.f32.mrb[0].mxu0
          %v903 = vpop.f32.mrb[0].mxu0
          %v904 = vadd.f32 0.0, %v903
          %v905 = vpop.f32.mrb[0].mxu0
          %906 = vmatprep.mubr.bf16.mxu0 0
          %907 = vmatmul.mubr.bf16.gmra.mrb[0].mxu0 %v547
          %v908 = vpop.f32.mrb[0].mxu0
          %v909 = vadd.f32 0.0, %v908
          %v910 = vpop.f32.mrb[0].mxu0
          %v911 = vpop.f32.mrb[0].mxu0
          %v912 = vadd.f32 0.0, %v911
          %v913 = vpop.f32.mrb[0].mxu0
          %914 = vmatprep.mubr.bf16.mxu0 0
          %915 = vmatmul.mubr.bf16.gmra.mrb[0].mxu0 %v548
          %v916 = vpop.f32.mrb[0].mxu0
          %v917 = vadd.f32 0.0, %v916
          %v918 = vpop.f32.mrb[0].mxu0
          %v919 = vpop.f32.mrb[0].mxu0
          %v920 = vadd.f32 0.0, %v919
          %v921 = vpop.f32.mrb[0].mxu0
          %922 = vmatprep.mubr.bf16.mxu0 0
          %923 = vmatmul.mubr.bf16.gmra.mrb[0].mxu0 %v549
          %v924 = vpop.f32.mrb[0].mxu0
          %v925 = vadd.f32 0.0, %v924
          %v926 = vpop.f32.mrb[0].mxu0
          %v927 = vpop.f32.mrb[0].mxu0
          %v928 = vadd.f32 0.0, %v927
          %v929 = vpop.f32.mrb[0].mxu0
          %930 = vmatprep.mubr.bf16.mxu0 0
          %931 = vmatmul.mubr.bf16.gmra.mrb[0].mxu0 %v550
          %v932 = vpop.f32.mrb[0].mxu0
          %v933 = vadd.f32 0.0, %v932
          %v934 = vpop.f32.mrb[0].mxu0
          %v935 = vpop.f32.mrb[0].mxu0
          %v936 = vadd.f32 0.0, %v935
          %v937 = vpop.f32.mrb[0].mxu0
          %938 = vmatprep.mubr.bf16.mxu0 0
          %939 = vmatmul.mubr.bf16.gmra.mrb[0].mxu0 %v551
          %v940 = vpop.f32.mrb[0].mxu0
          %v941 = vadd.f32 0.0, %v940
          %v942 = vpop.f32.mrb[0].mxu0
          %v943 = vpop.f32.mrb[0].mxu0
          %v944 = vadd.f32 0.0, %v943
          %v945 = vpop.f32.mrb[0].mxu0
          %946 = vmatprep.mubr.bf16.mxu0 0
          %947 = vmatmul.mubr.bf16.gmra.mrb[0].mxu0 %v552
          %v948 = vpop.f32.mrb[0].mxu0
          %v949 = vadd.f32 0.0, %v948
          %v950 = vpop.f32.mrb[0].mxu0
          %v951 = vpop.f32.mrb[0].mxu0
          %v952 = vadd.f32 0.0, %v951
          %v953 = vpop.f32.mrb[0].mxu0
          %954 = vdwg.mxu0
          %v955 = vpack.c.bf16 %v832, %v829
          %v956 = vpack.c.bf16 %v840, %v837
          %v957 = vpack.c.bf16 %v848, %v845
          %v958 = vpack.c.bf16 %v856, %v853
          %v959 = vpack.c.bf16 %v864, %v861
          %v960 = vpack.c.bf16 %v872, %v869
          %v961 = vpack.c.bf16 %v880, %v877
          %v962 = vpack.c.bf16 %v888, %v885
          %v963 = vpack.c.bf16 %v896, %v893
          %v964 = vpack.c.bf16 %v904, %v901
          %v965 = vpack.c.bf16 %v912, %v909
          %v966 = vpack.c.bf16 %v920, %v917
          %v967 = vpack.c.bf16 %v928, %v925
          %v968 = vpack.c.bf16 %v936, %v933
          %v969 = vpack.c.bf16 %v944, %v941
          %v970 = vpack.c.bf16 %v952, %v949
          %971 = vst [vmem:[#allocation3] sm:$0xff] %v955
          %972 = vst [vmem:[#allocation3 + $0x8] sm:$0xff] %v956
          %973 = vst [vmem:[#allocation3 + $0x10] sm:$0xff] %v957
          %974 = vst [vmem:[#allocation3 + $0x18] sm:$0xff] %v958
          %975 = vst [vmem:[#allocation3 + $0x20] sm:$0xff] %v959
          %976 = vst [vmem:[#allocation3 + $0x28] sm:$0xff] %v960
          %977 = vst [vmem:[#allocation3 + $0x30] sm:$0xff] %v961
          %978 = vst [vmem:[#allocation3 + $0x38] sm:$0xff] %v962
          %979 = vst [vmem:[#allocation3 + $0x40] sm:$0xff] %v963
          %980 = vst [vmem:[#allocation3 + $0x48] sm:$0xff] %v964
          %981 = vst [vmem:[#allocation3 + $0x50] sm:$0xff] %v965
          %982 = vst [vmem:[#allocation3 + $0x58] sm:$0xff] %v966
          %983 = vst [vmem:[#allocation3 + $0x60] sm:$0xff] %v967
          %984 = vst [vmem:[#allocation3 + $0x68] sm:$0xff] %v968
          %985 = vst [vmem:[#allocation3 + $0x70] sm:$0xff] %v969
          %986 = vst [vmem:[#allocation3 + $0x78] sm:$0xff] %v970
        $region72: #{tpu_custom_call.1} parent=43 // pred_fallthru
          _
        %v987 = vld [vmem:[%s373] sm:$0xff]
        %v988 = vld [vmem:[%s373 + $0x8] sm:$0xff]
        %v989 = vld [vmem:[%s373 + $0x10] sm:$0xff]
        %v990 = vld [vmem:[%s373 + $0x18] sm:$0xff]
        %v991 = vld [vmem:[%s373 + $0x20] sm:$0xff]
        %v992 = vld [vmem:[%s373 + $0x28] sm:$0xff]
        %v993 = vld [vmem:[%s373 + $0x30] sm:$0xff]
        %v994 = vld [vmem:[%s373 + $0x38] sm:$0xff]
        %v995 = vld [vmem:[%s373 + $0x40] sm:$0xff]
        %v996 = vld [vmem:[%s373 + $0x48] sm:$0xff]
        %v997 = vld [vmem:[%s373 + $0x50] sm:$0xff]
        %v998 = vld [vmem:[%s373 + $0x58] sm:$0xff]
        %v999 = vld [vmem:[%s373 + $0x60] sm:$0xff]
        %v1000 = vld [vmem:[%s373 + $0x68] sm:$0xff]
        %v1001 = vld [vmem:[%s373 + $0x70] sm:$0xff]
        %v1002 = vld [vmem:[%s373 + $0x78] sm:$0xff]
        %v1003 = vpack.c.bf16 %v988, %v987
        %v1004 = vpack.c.bf16 %v990, %v989
        %v1005 = vpack.c.bf16 %v992, %v991
        %v1006 = vpack.c.bf16 %v994, %v993
        %v1007 = vpack.c.bf16 %v996, %v995
        %v1008 = vpack.c.bf16 %v998, %v997
        %v1009 = vpack.c.bf16 %v1000, %v999
        %v1010 = vpack.c.bf16 %v1002, %v1001
        %v1011 = vld [vmem:[#allocation10] sm:$0xff]
        %v1012 = vld [vmem:[#allocation10 + $0x8] sm:$0xff]
        %v1013 = vld [vmem:[#allocation10 + $0x10] sm:$0xff]
        %v1014 = vld [vmem:[#allocation10 + $0x18] sm:$0xff]
        %v1015 = vld [vmem:[#allocation10 + $0x20] sm:$0xff]
        %v1016 = vld [vmem:[#allocation10 + $0x28] sm:$0xff]
        %v1017 = vld [vmem:[#allocation10 + $0x30] sm:$0xff]
        %v1018 = vld [vmem:[#allocation10 + $0x38] sm:$0xff]
        %v1019 = vld [vmem:[#allocation10 + $0x40] sm:$0xff]
        %v1020 = vld [vmem:[#allocation10 + $0x48] sm:$0xff]
        %v1021 = vld [vmem:[#allocation10 + $0x50] sm:$0xff]
        %v1022 = vld [vmem:[#allocation10 + $0x58] sm:$0xff]
        %v1023 = vld [vmem:[#allocation10 + $0x60] sm:$0xff]
        %v1024 = vld [vmem:[#allocation10 + $0x68] sm:$0xff]
        %v1025 = vld [vmem:[#allocation10 + $0x70] sm:$0xff]
        %v1026 = vld [vmem:[#allocation10 + $0x78] sm:$0xff]
        %v1027 = vpack.c.bf16 %v1012, %v1011
        %v1028 = vpack.c.bf16 %v1014, %v1013
        %v1029 = vpack.c.bf16 %v1016, %v1015
        %v1030 = vpack.c.bf16 %v1018, %v1017
        %v1031 = vpack.c.bf16 %v1020, %v1019
        %v1032 = vpack.c.bf16 %v1022, %v1021
        %v1033 = vpack.c.bf16 %v1024, %v1023
        %v1034 = vpack.c.bf16 %v1026, %v1025
        %1035 = vmatprep.subr.bf16.mxu0 0
        %1036 = vmatpush1.bf16.msra.mxu0 %v1027
        %1037 = vmatprep.subr.bf16.mxu0 0
        %1038 = vmatpush1.bf16.msra.mxu0 %v1028
        %1039 = vmatprep.subr.bf16.mxu0 0
        %1040 = vmatpush1.bf16.msra.mxu0 %v1029
        %1041 = vmatprep.subr.bf16.mxu0 0
        %1042 = vmatpush1.bf16.msra.mxu0 %v1030
        %1043 = vmatprep.subr.bf16.mxu0 0
        %1044 = vmatpush1.bf16.msra.mxu0 %v1031
        %1045 = vmatprep.subr.bf16.mxu0 0
        %1046 = vmatpush1.bf16.msra.mxu0 %v1032
        %1047 = vmatprep.subr.bf16.mxu0 0
        %1048 = vmatpush1.bf16.msra.mxu0 %v1033
        %1049 = vmatprep.subr.bf16.mxu0 0
        %1050 = vmatpush1.bf16.msra.mxu0 %v1034
        %1051 = vmatprep.subr.bf16.mxu0 0
        %1052 = vmatpush1.bf16.msra.mxu0 0
        %1053 = vmatprep.subr.bf16.mxu0 0
        %1054 = vmatpush1.bf16.msra.mxu0 0
        %1055 = vmatprep.subr.bf16.mxu0 0
        %1056 = vmatpush1.bf16.msra.mxu0 0
        %1057 = vmatprep.subr.bf16.mxu0 0
        %1058 = vmatpush1.bf16.msra.mxu0 0
        %1059 = vmatprep.subr.bf16.mxu0 0
        %1060 = vmatpush1.bf16.msra.mxu0 0
        %1061 = vmatprep.subr.bf16.mxu0 0
        %1062 = vmatpush1.bf16.msra.mxu0 0
        %1063 = vmatprep.subr.bf16.mxu0 0
        %1064 = vmatpush1.bf16.msra.mxu0 0
        %1065 = vmatprep.subr.bf16.mxu0 0
        %1066 = vmatpush1.bf16.msra.mxu0 0
        %1067 = vmatprep.mubr.bf16.mxu0 0
        %1068 = vmatmul.mubr.bf16.gmra.mrb[0].mxu0 %v1003
        %v1069 = vpop.f32.mrb[0].mxu0
        %v1070 = vadd.f32 0.0, %v1069
        %v1071 = vpop.f32.mrb[0].mxu0
        %v1072 = vpop.f32.mrb[0].mxu0
        %v1073 = vadd.f32 0.0, %v1072
        %v1074 = vpop.f32.mrb[0].mxu0
        %1075 = vmatprep.mubr.bf16.mxu0 0
        %1076 = vmatmul.mubr.bf16.gmra.mrb[0].mxu0 %v1004
        %v1077 = vpop.f32.mrb[0].mxu0
        %v1078 = vadd.f32 0.0, %v1077
        %v1079 = vpop.f32.mrb[0].mxu0
        %v1080 = vpop.f32.mrb[0].mxu0
        %v1081 = vadd.f32 0.0, %v1080
        %v1082 = vpop.f32.mrb[0].mxu0
        %1083 = vmatprep.mubr.bf16.mxu0 0
        %1084 = vmatmul.mubr.bf16.gmra.mrb[0].mxu0 %v1005
        %v1085 = vpop.f32.mrb[0].mxu0
        %v1086 = vadd.f32 0.0, %v1085
        %v1087 = vpop.f32.mrb[0].mxu0
        %v1088 = vpop.f32.mrb[0].mxu0
        %v1089 = vadd.f32 0.0, %v1088
        %v1090 = vpop.f32.mrb[0].mxu0
        %1091 = vmatprep.mubr.bf16.mxu0 0
        %1092 = vmatmul.mubr.bf16.gmra.mrb[0].mxu0 %v1006
        %v1093 = vpop.f32.mrb[0].mxu0
        %v1094 = vadd.f32 0.0, %v1093
        %v1095 = vpop.f32.mrb[0].mxu0
        %v1096 = vpop.f32.mrb[0].mxu0
        %v1097 = vadd.f32 0.0, %v1096
        %v1098 = vpop.f32.mrb[0].mxu0
        %1099 = vmatprep.mubr.bf16.mxu0 0
        %1100 = vmatmul.mubr.bf16.gmra.mrb[0].mxu0 %v1007
        %v1101 = vpop.f32.mrb[0].mxu0
        %v1102 = vadd.f32 0.0, %v1101
        %v1103 = vpop.f32.mrb[0].mxu0
        %v1104 = vpop.f32.mrb[0].mxu0
        %v1105 = vadd.f32 0.0, %v1104
        %v1106 = vpop.f32.mrb[0].mxu0
        %1107 = vmatprep.mubr.bf16.mxu0 0
        %1108 = vmatmul.mubr.bf16.gmra.mrb[0].mxu0 %v1008
        %v1109 = vpop.f32.mrb[0].mxu0
        %v1110 = vadd.f32 0.0, %v1109
        %v1111 = vpop.f32.mrb[0].mxu0
        %v1112 = vpop.f32.mrb[0].mxu0
        %v1113 = vadd.f32 0.0, %v1112
        %v1114 = vpop.f32.mrb[0].mxu0
        %1115 = vmatprep.mubr.bf16.mxu0 0
        %1116 = vmatmul.mubr.bf16.gmra.mrb[0].mxu0 %v1009
        %v1117 = vpop.f32.mrb[0].mxu0
        %v1118 = vadd.f32 0.0, %v1117
        %v1119 = vpop.f32.mrb[0].mxu0
        %v1120 = vpop.f32.mrb[0].mxu0
        %v1121 = vadd.f32 0.0, %v1120
        %v1122 = vpop.f32.mrb[0].mxu0
        %1123 = vmatprep.mubr.bf16.mxu0 0
        %1124 = vmatmul.mubr.bf16.gmra.mrb[0].mxu0 %v1010
        %v1125 = vpop.f32.mrb[0].mxu0
        %v1126 = vadd.f32 0.0, %v1125
        %v1127 = vpop.f32.mrb[0].mxu0
        %v1128 = vpop.f32.mrb[0].mxu0
        %v1129 = vadd.f32 0.0, %v1128
        %v1130 = vpop.f32.mrb[0].mxu0
        %1131 = vdwg.mxu0
        %v1132 = vmul.f32 %v1070, 0.088388346
        %v1133 = vmul.f32 %v1073, 0.088388346
        %v1134 = vmul.f32 %v1078, 0.088388346
        %v1135 = vmul.f32 %v1081, 0.088388346
        %v1136 = vmul.f32 %v1086, 0.088388346
        %v1137 = vmul.f32 %v1089, 0.088388346
        %v1138 = vmul.f32 %v1094, 0.088388346
        %v1139 = vmul.f32 %v1097, 0.088388346
        %v1140 = vmul.f32 %v1102, 0.088388346
        %v1141 = vmul.f32 %v1105, 0.088388346
        %v1142 = vmul.f32 %v1110, 0.088388346
        %v1143 = vmul.f32 %v1113, 0.088388346
        %v1144 = vmul.f32 %v1118, 0.088388346
        %v1145 = vmul.f32 %v1121, 0.088388346
        %v1146 = vmul.f32 %v1126, 0.088388346
        %v1147 = vmul.f32 %v1129, 0.088388346
        %v1148 = vpack.c.bf16 %v1133, %v1132
        %v1149 = vpack.c.bf16 %v1135, %v1134
        %v1150 = vpack.c.bf16 %v1137, %v1136
        %v1151 = vpack.c.bf16 %v1139, %v1138
        %v1152 = vpack.c.bf16 %v1141, %v1140
        %v1153 = vpack.c.bf16 %v1143, %v1142
        %v1154 = vpack.c.bf16 %v1145, %v1144
        %v1155 = vpack.c.bf16 %v1147, %v1146
        %v1156 = vld [vmem:[#allocation2] sm:$0xff]
        %v1157 = vld [vmem:[#allocation2 + $0x8] sm:$0xff]
        %v1158 = vld [vmem:[#allocation2 + $0x10] sm:$0xff]
        %v1159 = vld [vmem:[#allocation2 + $0x18] sm:$0xff]
        %v1160 = vld [vmem:[#allocation2 + $0x20] sm:$0xff]
        %v1161 = vld [vmem:[#allocation2 + $0x28] sm:$0xff]
        %v1162 = vld [vmem:[#allocation2 + $0x30] sm:$0xff]
        %v1163 = vld [vmem:[#allocation2 + $0x38] sm:$0xff]
        %v1164 = vld [vmem:[#allocation2 + $0x40] sm:$0xff]
        %v1165 = vld [vmem:[#allocation2 + $0x48] sm:$0xff]
        %v1166 = vld [vmem:[#allocation2 + $0x50] sm:$0xff]
        %v1167 = vld [vmem:[#allocation2 + $0x58] sm:$0xff]
        %v1168 = vld [vmem:[#allocation2 + $0x60] sm:$0xff]
        %v1169 = vld [vmem:[#allocation2 + $0x68] sm:$0xff]
        %v1170 = vld [vmem:[#allocation2 + $0x70] sm:$0xff]
        %v1171 = vld [vmem:[#allocation2 + $0x78] sm:$0xff]
        %1172 = vmatprep.subr.bf16.mxu0 0
        %1173 = vmatpush1.bf16.xpose.msra.mxu0 %v1156
        %1174 = vmatprep.subr.bf16.mxu0 0
        %1175 = vmatpush1.bf16.xpose.msra.mxu0 %v1157
        %1176 = vmatprep.subr.bf16.mxu0 0
        %1177 = vmatpush1.bf16.xpose.msra.mxu0 %v1158
        %1178 = vmatprep.subr.bf16.mxu0 0
        %1179 = vmatpush1.bf16.xpose.msra.mxu0 %v1159
        %1180 = vmatprep.subr.bf16.mxu0 0
        %1181 = vmatpush1.bf16.xpose.msra.mxu0 %v1160
        %1182 = vmatprep.subr.bf16.mxu0 0
        %1183 = vmatpush1.bf16.xpose.msra.mxu0 %v1161
        %1184 = vmatprep.subr.bf16.mxu0 0
        %1185 = vmatpush1.bf16.xpose.msra.mxu0 %v1162
        %1186 = vmatprep.subr.bf16.mxu0 0
        %1187 = vmatpush1.bf16.xpose.msra.mxu0 %v1163
        %1188 = vmatprep.subr.bf16.mxu0 0
        %1189 = vmatpush1.bf16.xpose.msra.mxu0 %v1164
        %1190 = vmatprep.subr.bf16.mxu0 0
        %1191 = vmatpush1.bf16.xpose.msra.mxu0 %v1165
        %1192 = vmatprep.subr.bf16.mxu0 0
        %1193 = vmatpush1.bf16.xpose.msra.mxu0 %v1166
        %1194 = vmatprep.subr.bf16.mxu0 0
        %1195 = vmatpush1.bf16.xpose.msra.mxu0 %v1167
        %1196 = vmatprep.subr.bf16.mxu0 0
        %1197 = vmatpush1.bf16.xpose.msra.mxu0 %v1168
        %1198 = vmatprep.subr.bf16.mxu0 0
        %1199 = vmatpush1.bf16.xpose.msra.mxu0 %v1169
        %1200 = vmatprep.subr.bf16.mxu0 0
        %1201 = vmatpush1.bf16.xpose.msra.mxu0 %v1170
        %1202 = vmatprep.subr.bf16.mxu0 0
        %1203 = vmatpush1.bf16.xpose.msra.mxu0 %v1171
        %1204 = vmatprep.mubr.bf16.mxu0 0
        %1205 = vmatmul.mubr.bf16.gmra.mrb[0].mxu0 %v1148
        %v1206 = vpop.f32.mrb[0].mxu0
        %v1207 = vadd.f32 0.0, %v1206
        %v1208 = vpop.f32.mrb[0].mxu0
        %v1209 = vadd.f32 0.0, %v1208
        %v1210 = vpop.f32.mrb[0].mxu0
        %v1211 = vadd.f32 0.0, %v1210
        %v1212 = vpop.f32.mrb[0].mxu0
        %v1213 = vadd.f32 0.0, %v1212
        %1214 = vmatprep.mubr.bf16.mxu0 0
        %1215 = vmatmul.mubr.bf16.gmra.mrb[0].mxu0 %v1149
        %v1216 = vpop.f32.mrb[0].mxu0
        %v1217 = vadd.f32 0.0, %v1216
        %v1218 = vpop.f32.mrb[0].mxu0
        %v1219 = vadd.f32 0.0, %v1218
        %v1220 = vpop.f32.mrb[0].mxu0
        %v1221 = vadd.f32 0.0, %v1220
        %v1222 = vpop.f32.mrb[0].mxu0
        %v1223 = vadd.f32 0.0, %v1222
        %1224 = vmatprep.mubr.bf16.mxu0 0
        %1225 = vmatmul.mubr.bf16.gmra.mrb[0].mxu0 %v1150
        %v1226 = vpop.f32.mrb[0].mxu0
        %v1227 = vadd.f32 0.0, %v1226
        %v1228 = vpop.f32.mrb[0].mxu0
        %v1229 = vadd.f32 0.0, %v1228
        %v1230 = vpop.f32.mrb[0].mxu0
        %v1231 = vadd.f32 0.0, %v1230
        %v1232 = vpop.f32.mrb[0].mxu0
        %v1233 = vadd.f32 0.0, %v1232
        %1234 = vmatprep.mubr.bf16.mxu0 0
        %1235 = vmatmul.mubr.bf16.gmra.mrb[0].mxu0 %v1151
        %v1236 = vpop.f32.mrb[0].mxu0
        %v1237 = vadd.f32 0.0, %v1236
        %v1238 = vpop.f32.mrb[0].mxu0
        %v1239 = vadd.f32 0.0, %v1238
        %v1240 = vpop.f32.mrb[0].mxu0
        %v1241 = vadd.f32 0.0, %v1240
        %v1242 = vpop.f32.mrb[0].mxu0
        %v1243 = vadd.f32 0.0, %v1242
        %1244 = vmatprep.mubr.bf16.mxu0 0
        %1245 = vmatmul.mubr.bf16.gmra.mrb[0].mxu0 %v1152
        %v1246 = vpop.f32.mrb[0].mxu0
        %v1247 = vadd.f32 0.0, %v1246
        %v1248 = vpop.f32.mrb[0].mxu0
        %v1249 = vadd.f32 0.0, %v1248
        %v1250 = vpop.f32.mrb[0].mxu0
        %v1251 = vadd.f32 0.0, %v1250
        %v1252 = vpop.f32.mrb[0].mxu0
        %v1253 = vadd.f32 0.0, %v1252
        %1254 = vmatprep.mubr.bf16.mxu0 0
        %1255 = vmatmul.mubr.bf16.gmra.mrb[0].mxu0 %v1153
        %v1256 = vpop.f32.mrb[0].mxu0
        %v1257 = vadd.f32 0.0, %v1256
        %v1258 = vpop.f32.mrb[0].mxu0
        %v1259 = vadd.f32 0.0, %v1258
        %v1260 = vpop.f32.mrb[0].mxu0
        %v1261 = vadd.f32 0.0, %v1260
        %v1262 = vpop.f32.mrb[0].mxu0
        %v1263 = vadd.f32 0.0, %v1262
        %1264 = vmatprep.mubr.bf16.mxu0 0
        %1265 = vmatmul.mubr.bf16.gmra.mrb[0].mxu0 %v1154
        %v1266 = vpop.f32.mrb[0].mxu0
        %v1267 = vadd.f32 0.0, %v1266
        %v1268 = vpop.f32.mrb[0].mxu0
        %v1269 = vadd.f32 0.0, %v1268
        %v1270 = vpop.f32.mrb[0].mxu0
        %v1271 = vadd.f32 0.0, %v1270
        %v1272 = vpop.f32.mrb[0].mxu0
        %v1273 = vadd.f32 0.0, %v1272
        %1274 = vmatprep.mubr.bf16.mxu0 0
        %1275 = vmatmul.mubr.bf16.gmra.mrb[0].mxu0 %v1155
        %v1276 = vpop.f32.mrb[0].mxu0
        %v1277 = vadd.f32 0.0, %v1276
        %v1278 = vpop.f32.mrb[0].mxu0
        %v1279 = vadd.f32 0.0, %v1278
        %v1280 = vpop.f32.mrb[0].mxu0
        %v1281 = vadd.f32 0.0, %v1280
        %v1282 = vpop.f32.mrb[0].mxu0
        %v1283 = vadd.f32 0.0, %v1282
        %1284 = vdwg.mxu0
        %v1285 = vmax.f32 %v1207, %v1209
        %1286 = vmax.xlane.f32.xlu0 %v1285
        %v1287 = vpop.xlane.xlu0 %1286
        %v1288 = vmax.f32 %v1211, %v1213
        %1289 = vmax.xlane.f32.xlu0 %v1288
        %v1290 = vpop.xlane.xlu0 %1289
        %v1291 = vmax.f32 %v1217, %v1219
        %1292 = vmax.xlane.f32.xlu0 %v1291
        %v1293 = vpop.xlane.xlu0 %1292
        %v1294 = vmax.f32 %v1221, %v1223
        %1295 = vmax.xlane.f32.xlu0 %v1294
        %v1296 = vpop.xlane.xlu0 %1295
        %v1297 = vmax.f32 %v1227, %v1229
        %1298 = vmax.xlane.f32.xlu0 %v1297
        %v1299 = vpop.xlane.xlu0 %1298
        %v1300 = vmax.f32 %v1231, %v1233
        %1301 = vmax.xlane.f32.xlu0 %v1300
        %v1302 = vpop.xlane.xlu0 %1301
        %v1303 = vmax.f32 %v1237, %v1239
        %1304 = vmax.xlane.f32.xlu0 %v1303
        %v1305 = vpop.xlane.xlu0 %1304
        %v1306 = vmax.f32 %v1241, %v1243
        %1307 = vmax.xlane.f32.xlu0 %v1306
        %v1308 = vpop.xlane.xlu0 %1307
        %v1309 = vmax.f32 %v1247, %v1249
        %1310 = vmax.xlane.f32.xlu0 %v1309
        %v1311 = vpop.xlane.xlu0 %1310
        %v1312 = vmax.f32 %v1251, %v1253
        %1313 = vmax.xlane.f32.xlu0 %v1312
        %v1314 = vpop.xlane.xlu0 %1313
        %v1315 = vmax.f32 %v1257, %v1259
        %1316 = vmax.xlane.f32.xlu0 %v1315
        %v1317 = vpop.xlane.xlu0 %1316
        %v1318 = vmax.f32 %v1261, %v1263
        %1319 = vmax.xlane.f32.xlu0 %v1318
        %v1320 = vpop.xlane.xlu0 %1319
        %v1321 = vmax.f32 %v1267, %v1269
        %1322 = vmax.xlane.f32.xlu0 %v1321
        %v1323 = vpop.xlane.xlu0 %1322
        %v1324 = vmax.f32 %v1271, %v1273
        %1325 = vmax.xlane.f32.xlu0 %v1324
        %v1326 = vpop.xlane.xlu0 %1325
        %v1327 = vmax.f32 %v1277, %v1279
        %1328 = vmax.xlane.f32.xlu0 %v1327
        %v1329 = vpop.xlane.xlu0 %1328
        %v1330 = vmax.f32 %v1281, %v1283
        %1331 = vmax.xlane.f32.xlu0 %v1330
        %v1332 = vpop.xlane.xlu0 %1331
        %v1333 = vsub.f32 %v1207, %v1287
        %v1334 = vsub.f32 %v1209, %v1287
        %v1335 = vsub.f32 %v1211, %v1290
        %v1336 = vsub.f32 %v1213, %v1290
        %v1337 = vsub.f32 %v1217, %v1293
        %v1338 = vsub.f32 %v1219, %v1293
        %v1339 = vsub.f32 %v1221, %v1296
        %v1340 = vsub.f32 %v1223, %v1296
        %v1341 = vsub.f32 %v1227, %v1299
        %v1342 = vsub.f32 %v1229, %v1299
        %v1343 = vsub.f32 %v1231, %v1302
        %v1344 = vsub.f32 %v1233, %v1302
        %v1345 = vsub.f32 %v1237, %v1305
        %v1346 = vsub.f32 %v1239, %v1305
        %v1347 = vsub.f32 %v1241, %v1308
        %v1348 = vsub.f32 %v1243, %v1308
        %v1349 = vsub.f32 %v1247, %v1311
        %v1350 = vsub.f32 %v1249, %v1311
        %v1351 = vsub.f32 %v1251, %v1314
        %v1352 = vsub.f32 %v1253, %v1314
        %v1353 = vsub.f32 %v1257, %v1317
        %v1354 = vsub.f32 %v1259, %v1317
        %v1355 = vsub.f32 %v1261, %v1320
        %v1356 = vsub.f32 %v1263, %v1320
        %v1357 = vsub.f32 %v1267, %v1323
        %v1358 = vsub.f32 %v1269, %v1323
        %v1359 = vsub.f32 %v1271, %v1326
        %v1360 = vsub.f32 %v1273, %v1326
        %v1361 = vsub.f32 %v1277, %v1329
        %v1362 = vsub.f32 %v1279, %v1329
        %v1363 = vsub.f32 %v1281, %v1332
        %v1364 = vsub.f32 %v1283, %v1332
        %v1365 = vmul.f32 %v1333, 1.442695
        %v1366 = vpow.pop %v1365
        %v1367 = vmul.f32 %v1334, 1.442695
        %v1368 = vpow.pop %v1367
        %v1369 = vmul.f32 %v1335, 1.442695
        %v1370 = vpow.pop %v1369
        %v1371 = vmul.f32 %v1336, 1.442695
        %v1372 = vpow.pop %v1371
        %v1373 = vmul.f32 %v1337, 1.442695
        %v1374 = vpow.pop %v1373
        %v1375 = vmul.f32 %v1338, 1.442695
        %v1376 = vpow.pop %v1375
        %v1377 = vmul.f32 %v1339, 1.442695
        %v1378 = vpow.pop %v1377
        %v1379 = vmul.f32 %v1340, 1.442695
        %v1380 = vpow.pop %v1379
        %v1381 = vmul.f32 %v1341, 1.442695
        %v1382 = vpow.pop %v1381
        %v1383 = vmul.f32 %v1342, 1.442695
        %v1384 = vpow.pop %v1383
        %v1385 = vmul.f32 %v1343, 1.442695
        %v1386 = vpow.pop %v1385
        %v1387 = vmul.f32 %v1344, 1.442695
        %v1388 = vpow.pop %v1387
        %v1389 = vmul.f32 %v1345, 1.442695
        %v1390 = vpow.pop %v1389
        %v1391 = vmul.f32 %v1346, 1.442695
        %v1392 = vpow.pop %v1391
        %v1393 = vmul.f32 %v1347, 1.442695
        %v1394 = vpow.pop %v1393
        %v1395 = vmul.f32 %v1348, 1.442695
        %v1396 = vpow.pop %v1395
        %v1397 = vmul.f32 %v1349, 1.442695
        %v1398 = vpow.pop %v1397
        %v1399 = vmul.f32 %v1350, 1.442695
        %v1400 = vpow.pop %v1399
        %v1401 = vmul.f32 %v1351, 1.442695
        %v1402 = vpow.pop %v1401
        %v1403 = vmul.f32 %v1352, 1.442695
        %v1404 = vpow.pop %v1403
        %v1405 = vmul.f32 %v1353, 1.442695
        %v1406 = vpow.pop %v1405
        %v1407 = vmul.f32 %v1354, 1.442695
        %v1408 = vpow.pop %v1407
        %v1409 = vmul.f32 %v1355, 1.442695
        %v1410 = vpow.pop %v1409
        %v1411 = vmul.f32 %v1356, 1.442695
        %v1412 = vpow.pop %v1411
        %v1413 = vmul.f32 %v1357, 1.442695
        %v1414 = vpow.pop %v1413
        %v1415 = vmul.f32 %v1358, 1.442695
        %v1416 = vpow.pop %v1415
        %v1417 = vmul.f32 %v1359, 1.442695
        %v1418 = vpow.pop %v1417
        %v1419 = vmul.f32 %v1360, 1.442695
        %v1420 = vpow.pop %v1419
        %v1421 = vmul.f32 %v1361, 1.442695
        %v1422 = vpow.pop %v1421
        %v1423 = vmul.f32 %v1362, 1.442695
        %v1424 = vpow.pop %v1423
        %v1425 = vmul.f32 %v1363, 1.442695
        %v1426 = vpow.pop %v1425
        %v1427 = vmul.f32 %v1364, 1.442695
        %v1428 = vpow.pop %v1427
        %v1429 = vadd.f32 %v1366, %v1368
        %1430 = vadd.xlane.f32.xlu0 %v1429
        %v1431 = vpop.xlane.xlu0 %1430
        %v1432 = vadd.f32 %v1370, %v1372
        %1433 = vadd.xlane.f32.xlu0 %v1432
        %v1434 = vpop.xlane.xlu0 %1433
        %v1435 = vadd.f32 %v1374, %v1376
        %1436 = vadd.xlane.f32.xlu0 %v1435
        %v1437 = vpop.xlane.xlu0 %1436
        %v1438 = vadd.f32 %v1378, %v1380
        %1439 = vadd.xlane.f32.xlu0 %v1438
        %v1440 = vpop.xlane.xlu0 %1439
        %v1441 = vadd.f32 %v1382, %v1384
        %1442 = vadd.xlane.f32.xlu0 %v1441
        %v1443 = vpop.xlane.xlu0 %1442
        %v1444 = vadd.f32 %v1386, %v1388
        %1445 = vadd.xlane.f32.xlu0 %v1444
        %v1446 = vpop.xlane.xlu0 %1445
        %v1447 = vadd.f32 %v1390, %v1392
        %1448 = vadd.xlane.f32.xlu0 %v1447
        %v1449 = vpop.xlane.xlu0 %1448
        %v1450 = vadd.f32 %v1394, %v1396
        %1451 = vadd.xlane.f32.xlu0 %v1450
        %v1452 = vpop.xlane.xlu0 %1451
        %v1453 = vadd.f32 %v1398, %v1400
        %1454 = vadd.xlane.f32.xlu0 %v1453
        %v1455 = vpop.xlane.xlu0 %1454
        %v1456 = vadd.f32 %v1402, %v1404
        %1457 = vadd.xlane.f32.xlu0 %v1456
        %v1458 = vpop.xlane.xlu0 %1457
        %v1459 = vadd.f32 %v1406, %v1408
        %1460 = vadd.xlane.f32.xlu0 %v1459
        %v1461 = vpop.xlane.xlu0 %1460
        %v1462 = vadd.f32 %v1410, %v1412
        %1463 = vadd.xlane.f32.xlu0 %v1462
        %v1464 = vpop.xlane.xlu0 %1463
        %v1465 = vadd.f32 %v1414, %v1416
        %1466 = vadd.xlane.f32.xlu0 %v1465
        %v1467 = vpop.xlane.xlu0 %1466
        %v1468 = vadd.f32 %v1418, %v1420
        %1469 = vadd.xlane.f32.xlu0 %v1468
        %v1470 = vpop.xlane.xlu0 %1469
        %v1471 = vadd.f32 %v1422, %v1424
        %1472 = vadd.xlane.f32.xlu0 %v1471
        %v1473 = vpop.xlane.xlu0 %1472
        %v1474 = vadd.f32 %v1426, %v1428
        %1475 = vadd.xlane.f32.xlu0 %v1474
        %v1476 = vpop.xlane.xlu0 %1475
        %v1477 = vrcp.pop %v1431
        %v1478 = vrcp.pop %v1434
        %v1479 = vrcp.pop %v1437
        %v1480 = vrcp.pop %v1440
        %v1481 = vrcp.pop %v1443
        %v1482 = vrcp.pop %v1446
        %v1483 = vrcp.pop %v1449
        %v1484 = vrcp.pop %v1452
        %v1485 = vrcp.pop %v1455
        %v1486 = vrcp.pop %v1458
        %v1487 = vrcp.pop %v1461
        %v1488 = vrcp.pop %v1464
        %v1489 = vrcp.pop %v1467
        %v1490 = vrcp.pop %v1470
        %v1491 = vrcp.pop %v1473
        %v1492 = vrcp.pop %v1476
        %v1493 = vmul.f32 %v1366, %v1477
        %v1494 = vmul.f32 %v1368, %v1477
        %v1495 = vmul.f32 %v1370, %v1478
        %v1496 = vmul.f32 %v1372, %v1478
        %v1497 = vmul.f32 %v1374, %v1479
        %v1498 = vmul.f32 %v1376, %v1479
        %v1499 = vmul.f32 %v1378, %v1480
        %v1500 = vmul.f32 %v1380, %v1480
        %v1501 = vmul.f32 %v1382, %v1481
        %v1502 = vmul.f32 %v1384, %v1481
        %v1503 = vmul.f32 %v1386, %v1482
        %v1504 = vmul.f32 %v1388, %v1482
        %v1505 = vmul.f32 %v1390, %v1483
        %v1506 = vmul.f32 %v1392, %v1483
        %v1507 = vmul.f32 %v1394, %v1484
        %v1508 = vmul.f32 %v1396, %v1484
        %v1509 = vmul.f32 %v1398, %v1485
        %v1510 = vmul.f32 %v1400, %v1485
        %v1511 = vmul.f32 %v1402, %v1486
        %v1512 = vmul.f32 %v1404, %v1486
        %v1513 = vmul.f32 %v1406, %v1487
        %v1514 = vmul.f32 %v1408, %v1487
        %v1515 = vmul.f32 %v1410, %v1488
        %v1516 = vmul.f32 %v1412, %v1488
        %v1517 = vmul.f32 %v1414, %v1489
        %v1518 = vmul.f32 %v1416, %v1489
        %v1519 = vmul.f32 %v1418, %v1490
        %v1520 = vmul.f32 %v1420, %v1490
        %v1521 = vmul.f32 %v1422, %v1491
        %v1522 = vmul.f32 %v1424, %v1491
        %v1523 = vmul.f32 %v1426, %v1492
        %v1524 = vmul.f32 %v1428, %v1492
        %1525 = vst [vmem:[%s448] sm:$0xff] %v1493
        %1526 = vst [vmem:[%s448 + $0x8] sm:$0xff] %v1494
        %1527 = vst [vmem:[%s448 + $0x10] sm:$0xff] %v1495
        %1528 = vst [vmem:[%s448 + $0x18] sm:$0xff] %v1496
        %1529 = vst [vmem:[%s448 + $0x20] sm:$0xff] %v1497
        %1530 = vst [vmem:[%s448 + $0x28] sm:$0xff] %v1498
        %1531 = vst [vmem:[%s448 + $0x30] sm:$0xff] %v1499
        %1532 = vst [vmem:[%s448 + $0x38] sm:$0xff] %v1500
        %1533 = vst [vmem:[%s448 + $0x40] sm:$0xff] %v1501
        %1534 = vst [vmem:[%s448 + $0x48] sm:$0xff] %v1502
        %1535 = vst [vmem:[%s448 + $0x50] sm:$0xff] %v1503
        %1536 = vst [vmem:[%s448 + $0x58] sm:$0xff] %v1504
        %1537 = vst [vmem:[%s448 + $0x60] sm:$0xff] %v1505
        %1538 = vst [vmem:[%s448 + $0x68] sm:$0xff] %v1506
        %1539 = vst [vmem:[%s448 + $0x70] sm:$0xff] %v1507
        %1540 = vst [vmem:[%s448 + $0x78] sm:$0xff] %v1508
        %1541 = vst [vmem:[%s448 + $0x80] sm:$0xff] %v1509
        %1542 = vst [vmem:[%s448 + $0x88] sm:$0xff] %v1510
        %1543 = vst [vmem:[%s448 + $0x90] sm:$0xff] %v1511
        %1544 = vst [vmem:[%s448 + $0x98] sm:$0xff] %v1512
        %1545 = vst [vmem:[%s448 + $0xa0] sm:$0xff] %v1513
        %1546 = vst [vmem:[%s448 + $0xa8] sm:$0xff] %v1514
        %1547 = vst [vmem:[%s448 + $0xb0] sm:$0xff] %v1515
        %1548 = vst [vmem:[%s448 + $0xb8] sm:$0xff] %v1516
        %1549 = vst [vmem:[%s448 + $0xc0] sm:$0xff] %v1517
        %1550 = vst [vmem:[%s448 + $0xc8] sm:$0xff] %v1518
        %1551 = vst [vmem:[%s448 + $0xd0] sm:$0xff] %v1519
        %1552 = vst [vmem:[%s448 + $0xd8] sm:$0xff] %v1520
        %1553 = vst [vmem:[%s448 + $0xe0] sm:$0xff] %v1521
        %1554 = vst [vmem:[%s448 + $0xe8] sm:$0xff] %v1522
        %1555 = vst [vmem:[%s448 + $0xf0] sm:$0xff] %v1523
        %1556 = vst [vmem:[%s448 + $0xf8] sm:$0xff] %v1524
        %v1557 = vpack.c.bf16 %v1495, %v1493
        %v1558 = vpack.c.bf16 %v1496, %v1494
        %v1559 = vpack.c.bf16 %v1499, %v1497
        %v1560 = vpack.c.bf16 %v1500, %v1498
        %v1561 = vpack.c.bf16 %v1503, %v1501
        %v1562 = vpack.c.bf16 %v1504, %v1502
        %v1563 = vpack.c.bf16 %v1507, %v1505
        %v1564 = vpack.c.bf16 %v1508, %v1506
        %v1565 = vpack.c.bf16 %v1511, %v1509
        %v1566 = vpack.c.bf16 %v1512, %v1510
        %v1567 = vpack.c.bf16 %v1515, %v1513
        %v1568 = vpack.c.bf16 %v1516, %v1514
        %v1569 = vpack.c.bf16 %v1519, %v1517
        %v1570 = vpack.c.bf16 %v1520, %v1518
        %v1571 = vpack.c.bf16 %v1523, %v1521
        %v1572 = vpack.c.bf16 %v1524, %v1522
        %v1573 = vld [vmem:[#allocation3] sm:$0xff]
        %v1574 = vld [vmem:[#allocation3 + $0x8] sm:$0xff]
        %v1575 = vld [vmem:[#allocation3 + $0x10] sm:$0xff]
        %v1576 = vld [vmem:[#allocation3 + $0x18] sm:$0xff]
        %v1577 = vld [vmem:[#allocation3 + $0x20] sm:$0xff]
        %v1578 = vld [vmem:[#allocation3 + $0x28] sm:$0xff]
        %v1579 = vld [vmem:[#allocation3 + $0x30] sm:$0xff]
        %v1580 = vld [vmem:[#allocation3 + $0x38] sm:$0xff]
        %v1581 = vld [vmem:[#allocation3 + $0x40] sm:$0xff]
        %v1582 = vld [vmem:[#allocation3 + $0x48] sm:$0xff]
        %v1583 = vld [vmem:[#allocation3 + $0x50] sm:$0xff]
        %v1584 = vld [vmem:[#allocation3 + $0x58] sm:$0xff]
        %v1585 = vld [vmem:[#allocation3 + $0x60] sm:$0xff]
        %v1586 = vld [vmem:[#allocation3 + $0x68] sm:$0xff]
        %v1587 = vld [vmem:[#allocation3 + $0x70] sm:$0xff]
        %v1588 = vld [vmem:[#allocation3 + $0x78] sm:$0xff]
        %1589 = vmatprep.subr.bf16.mxu0 0
        %1590 = vmatpush1.bf16.msra.mxu0 %v1573
        %1591 = vmatprep.subr.bf16.mxu0 0
        %1592 = vmatpush1.bf16.msra.mxu0 %v1574
        %1593 = vmatprep.subr.bf16.mxu0 0
        %1594 = vmatpush1.bf16.msra.mxu0 %v1575
        %1595 = vmatprep.subr.bf16.mxu0 0
        %1596 = vmatpush1.bf16.msra.mxu0 %v1576
        %1597 = vmatprep.subr.bf16.mxu0 0
        %1598 = vmatpush1.bf16.msra.mxu0 %v1577
        %1599 = vmatprep.subr.bf16.mxu0 0
        %1600 = vmatpush1.bf16.msra.mxu0 %v1578
        %1601 = vmatprep.subr.bf16.mxu0 0
        %1602 = vmatpush1.bf16.msra.mxu0 %v1579
        %1603 = vmatprep.subr.bf16.mxu0 0
        %1604 = vmatpush1.bf16.msra.mxu0 %v1580
        %1605 = vmatprep.subr.bf16.mxu0 0
        %1606 = vmatpush1.bf16.msra.mxu0 %v1581
        %1607 = vmatprep.subr.bf16.mxu0 0
        %1608 = vmatpush1.bf16.msra.mxu0 %v1582
        %1609 = vmatprep.subr.bf16.mxu0 0
        %1610 = vmatpush1.bf16.msra.mxu0 %v1583
        %1611 = vmatprep.subr.bf16.mxu0 0
        %1612 = vmatpush1.bf16.msra.mxu0 %v1584
        %1613 = vmatprep.subr.bf16.mxu0 0
        %1614 = vmatpush1.bf16.msra.mxu0 %v1585
        %1615 = vmatprep.subr.bf16.mxu0 0
        %1616 = vmatpush1.bf16.msra.mxu0 %v1586
        %1617 = vmatprep.subr.bf16.mxu0 0
        %1618 = vmatpush1.bf16.msra.mxu0 %v1587
        %1619 = vmatprep.subr.bf16.mxu0 0
        %1620 = vmatpush1.bf16.msra.mxu0 %v1588
        %1621 = vmatprep.mubr.bf16.mxu0 %v1558
        %1622 = vmatmul.mubr.bf16.gmra.mrb[0].mxu0 %v1557
        %v1623 = vpop.f32.mrb[0].mxu0
        %v1624 = vadd.f32 0.0, %v1623
        %v1625 = vpop.f32.mrb[0].mxu0
        %v1626 = vpop.f32.mrb[0].mxu0
        %v1627 = vadd.f32 0.0, %v1626
        %v1628 = vpop.f32.mrb[0].mxu0
        %1629 = vmatprep.mubr.bf16.mxu0 %v1560
        %1630 = vmatmul.mubr.bf16.gmra.mrb[0].mxu0 %v1559
        %v1631 = vpop.f32.mrb[0].mxu0
        %v1632 = vadd.f32 0.0, %v1631
        %v1633 = vpop.f32.mrb[0].mxu0
        %v1634 = vpop.f32.mrb[0].mxu0
        %v1635 = vadd.f32 0.0, %v1634
        %v1636 = vpop.f32.mrb[0].mxu0
        %1637 = vmatprep.mubr.bf16.mxu0 %v1562
        %1638 = vmatmul.mubr.bf16.gmra.mrb[0].mxu0 %v1561
        %v1639 = vpop.f32.mrb[0].mxu0
        %v1640 = vadd.f32 0.0, %v1639
        %v1641 = vpop.f32.mrb[0].mxu0
        %v1642 = vpop.f32.mrb[0].mxu0
        %v1643 = vadd.f32 0.0, %v1642
        %v1644 = vpop.f32.mrb[0].mxu0
        %1645 = vmatprep.mubr.bf16.mxu0 %v1564
        %1646 = vmatmul.mubr.bf16.gmra.mrb[0].mxu0 %v1563
        %v1647 = vpop.f32.mrb[0].mxu0
        %v1648 = vadd.f32 0.0, %v1647
        %v1649 = vpop.f32.mrb[0].mxu0
        %v1650 = vpop.f32.mrb[0].mxu0
        %v1651 = vadd.f32 0.0, %v1650
        %v1652 = vpop.f32.mrb[0].mxu0
        %1653 = vmatprep.mubr.bf16.mxu0 %v1566
        %1654 = vmatmul.mubr.bf16.gmra.mrb[0].mxu0 %v1565
        %v1655 = vpop.f32.mrb[0].mxu0
        %v1656 = vadd.f32 0.0, %v1655
        %v1657 = vpop.f32.mrb[0].mxu0
        %v1658 = vpop.f32.mrb[0].mxu0
        %v1659 = vadd.f32 0.0, %v1658
        %v1660 = vpop.f32.mrb[0].mxu0
        %1661 = vmatprep.mubr.bf16.mxu0 %v1568
        %1662 = vmatmul.mubr.bf16.gmra.mrb[0].mxu0 %v1567
        %v1663 = vpop.f32.mrb[0].mxu0
        %v1664 = vadd.f32 0.0, %v1663
        %v1665 = vpop.f32.mrb[0].mxu0
        %v1666 = vpop.f32.mrb[0].mxu0
        %v1667 = vadd.f32 0.0, %v1666
        %v1668 = vpop.f32.mrb[0].mxu0
        %1669 = vmatprep.mubr.bf16.mxu0 %v1570
        %1670 = vmatmul.mubr.bf16.gmra.mrb[0].mxu0 %v1569
        %v1671 = vpop.f32.mrb[0].mxu0
        %v1672 = vadd.f32 0.0, %v1671
        %v1673 = vpop.f32.mrb[0].mxu0
        %v1674 = vpop.f32.mrb[0].mxu0
        %v1675 = vadd.f32 0.0, %v1674
        %v1676 = vpop.f32.mrb[0].mxu0
        %1677 = vmatprep.mubr.bf16.mxu0 %v1572
        %1678 = vmatmul.mubr.bf16.gmra.mrb[0].mxu0 %v1571
        %v1679 = vpop.f32.mrb[0].mxu0
        %v1680 = vadd.f32 0.0, %v1679
        %v1681 = vpop.f32.mrb[0].mxu0
        %v1682 = vpop.f32.mrb[0].mxu0
        %v1683 = vadd.f32 0.0, %v1682
        %v1684 = vpop.f32.mrb[0].mxu0
        %1685 = vdwg.mxu0
        %1686 = vst [vmem:[%s441] sm:$0xff] %v1624
        %1687 = vst [vmem:[%s441 + $0x8] sm:$0xff] %v1627
        %1688 = vst [vmem:[%s441 + $0x10] sm:$0xff] %v1632
        %1689 = vst [vmem:[%s441 + $0x18] sm:$0xff] %v1635
        %1690 = vst [vmem:[%s441 + $0x20] sm:$0xff] %v1640
        %1691 = vst [vmem:[%s441 + $0x28] sm:$0xff] %v1643
        %1692 = vst [vmem:[%s441 + $0x30] sm:$0xff] %v1648
        %1693 = vst [vmem:[%s441 + $0x38] sm:$0xff] %v1651
        %1694 = vst [vmem:[%s441 + $0x40] sm:$0xff] %v1656
        %1695 = vst [vmem:[%s441 + $0x48] sm:$0xff] %v1659
        %1696 = vst [vmem:[%s441 + $0x50] sm:$0xff] %v1664
        %1697 = vst [vmem:[%s441 + $0x58] sm:$0xff] %v1667
        %1698 = vst [vmem:[%s441 + $0x60] sm:$0xff] %v1672
        %1699 = vst [vmem:[%s441 + $0x68] sm:$0xff] %v1675
        %1700 = vst [vmem:[%s441 + $0x70] sm:$0xff] %v1680
        %1701 = vst [vmem:[%s441 + $0x78] sm:$0xff] %v1683
        %s1702 = sand.u32 %s198, 1
        %s1703 = scalar_lea.sflag [#allocation6], %s1702
        %s1704 = sand.u32 %s198, 1
        %s1705 = smul.addr %s1704, 128
        %s1706 = scalar_lea.vmem [#allocation15], %s1705
        %s1707 = sand.u32 %s226, 1
        %s1708 = scalar_lea.sflag [#allocation17], %s1707
        %s1709 = sand.u32 %s226, 1
        %s1710 = smul.addr %s1709, 256
        %s1711 = scalar_lea.vmem [#allocation16], %s1710
        // Predicated region
        $region73: #{tpu_custom_call.1} parent=43 // pred_check
          %p1712 = pneg %p208
        $region74: #{tpu_custom_call.1} parent=43 // pred_check_branch
          %1714 = sbr.rel (%p1712) target = $region76
        $region75: #{tpu_custom_call.1} parent=43 // pred_region
          %s1715 = smul.u32 16, %s38
          %s1717 = ssub.s32 2048, 2048
          %1718 = vsyncadd %s1703, %s1717
          %s1719 = smul.addr %s37, 32
          %s1720 = sadd.s32 %s1715, %s1719
          %s1721 = smul.addr %s1720, 128
          %s1722 = scalar_lea.hbm %s6, %s1721
          %s1723 = sshll.u32 %s1706, 4
          %s1724 = int_to_ptr.vmem [resolvable:$true] %s1723
          %1729 = dma.vmem_to_hbm [thread:$0]  %s1724, 2048, %s1722, %s1703, 128, 128, 8
        $region76: #{tpu_custom_call.1} parent=43 // pred_fallthru
          _
        // Predicated region
        $region77: #{tpu_custom_call.1} parent=43 // pred_check
          %p1730 = pneg %p236
        $region78: #{tpu_custom_call.1} parent=43 // pred_check_branch
          %1732 = sbr.rel (%p1730) target = $region80
        $region79: #{tpu_custom_call.1} parent=43 // pred_region
          %s1733 = smul.u32 16, %s38
          %s1735 = ssub.s32 4096, 4096
          %1736 = vsyncadd %s1708, %s1735
          %s1737 = smul.addr %s1733, 2
          %s1738 = smul.addr %s37, 64
          %s1739 = sadd.s32 %s1737, %s1738
          %s1740 = smul.addr %s1739, 128
          %s1741 = scalar_lea.hbm %s7, %s1740
          %s1742 = sshll.u32 %s1711, 4
          %s1743 = int_to_ptr.vmem [resolvable:$true] %s1742
          %1748 = dma.vmem_to_hbm [thread:$0]  %s1743, 4096, %s1741, %s1708, 256, 256, 16
        $region80: #{tpu_custom_call.1} parent=43 // pred_fallthru
          _
      $region44: #{tpu_custom_call.1} parent=5 // pred_fallthru
        _
      %p1749 = scmp.le.s32.totalorder 2, %s28
      // Predicated region
      $region81: #{tpu_custom_call.1} parent=5 // pred_check
        %p1750 = pneg %p1749
      $region82: #{tpu_custom_call.1} parent=5 // pred_check_branch
        %1752 = sbr.rel (%p1750) target = $region84
      $region83: #{tpu_custom_call.1} parent=5 // pred_region
        %s1753 = ssub.s32 %s28, 2
        // Predicated region
        $region85: #{tpu_custom_call.1} parent=83 // pred_check
          %p1754 = pneg %p214
        $region86: #{tpu_custom_call.1} parent=83 // pred_check_branch
          %1756 = sbr.rel (%p1754) target = $region88
        $region87: #{tpu_custom_call.1} parent=83 // pred_region
          %s1757 = sand.u32 %s199, 1
          %s1758 = scalar_lea.sflag [#allocation6], %s1757
          %s1759 = sand.u32 %s199, 1
          %s1760 = smul.addr %s1759, 128
          %s1761 = scalar_lea.vmem [#allocation15], %s1760
          %1762 = dma.done %s1758, 2048
        $region88: #{tpu_custom_call.1} parent=83 // pred_fallthru
          _
        // Predicated region
        $region89: #{tpu_custom_call.1} parent=83 // pred_check
          %p1763 = pneg %p242
        $region90: #{tpu_custom_call.1} parent=83 // pred_check_branch
          %1765 = sbr.rel (%p1763) target = $region92
        $region91: #{tpu_custom_call.1} parent=83 // pred_region
          %s1766 = sand.u32 %s227, 1
          %s1767 = scalar_lea.sflag [#allocation17], %s1766
          %s1768 = sand.u32 %s227, 1
          %s1769 = smul.addr %s1768, 256
          %s1770 = scalar_lea.vmem [#allocation16], %s1769
          %1771 = dma.done %s1767, 4096
        $region92: #{tpu_custom_call.1} parent=83 // pred_fallthru
          _
      $region84: #{tpu_custom_call.1} parent=5 // pred_fallthru
        _
    $region6: #{tpu_custom_call.1} parent=1 // loop_footer
      %s32 = sadd.s32 1, %s28
    $region7: #{tpu_custom_call.1} parent=1 // loop_footer_branch
      %27 = sbr.rel target = $region3
    $region8: #{tpu_custom_call.1} parent=1 // loop_exit
      _
    %1772 = vsyncpa [#allocation5], 1
    %s1773 = scalar_lea.sflag [#allocation5], 1
    %1774 = vsyncpa %s1773, 1
    %1775 = vsyncpa [#allocation8], 1
    %s1776 = scalar_lea.sflag [#allocation8], 1
    %1777 = vsyncpa %s1776, 1
    %1778 = vsyncpa [#allocation11], 1
    %1779 = vsyncpa [#allocation14], 1
    %1780 = vsyncpa [#allocation6], 1
    %s1781 = scalar_lea.sflag [#allocation6], 1
    %1782 = vsyncpa %s1781, 1
    %1783 = vsyncpa [#allocation17], 1
    %s1784 = scalar_lea.sflag [#allocation17], 1
    %1785 = vsyncpa %s1784, 1

</llo_original>
